<compile_context>
chip_gen: v5e
topology: v5e:2x2
jax: 0.10.0
libtpu: 0.0.40
codegen_flags: <defaults>
</compile_context>

<pallas_src>
import functools
import math

import jax
import jax.numpy as jnp
from jax import lax
from jax.experimental import pallas as pl


# ----------------------------- in-kernel helpers ----------------------------

def _layernorm(x, g, b, eps=1e-12):
    mu = jnp.mean(x, axis=-1, keepdims=True)
    var = jnp.mean(jnp.square(x - mu), axis=-1, keepdims=True)
    return (x - mu) * lax.rsqrt(var + eps) * g + b


def _gelu(x):
    # TODO(synk): HF BERT uses erf-based GELU; tanh approximation used here.
    return 0.5 * x * (1.0 + jnp.tanh(0.7978845608028654 * (x + 0.044715 * x * x * x)))


# ------------------------------ fused kernel --------------------------------

def _fused_forward_kernel(
        ids_ref, mask_ref, wemb_ref, pemb_ref, temb_ref, emb_g_ref, emb_b_ref,
        wqkv_ref, bqkv_ref, wo_ref, bo_ref, ln1g_ref, ln1b_ref,
        w1_ref, b1_ref, w2_ref, b2_ref, ln2g_ref, ln2b_ref,
        poolw_ref, poolb_ref, fcw_ref, fcb_ref,
        out_ref, *, num_layers, num_heads, batch, seq, vocab):
    H = wemb_ref.shape[1]
    dH = H // num_heads
    T = batch * seq
    scale = 1.0 / math.sqrt(dH)
    f32 = jnp.float32
    bf16 = jnp.bfloat16

    # --- embedding lookup as one-hot matmul (uses otherwise-idle MXU) ---
    onehot = (lax.broadcasted_iota(jnp.int32, (T, vocab), 1)
              == ids_ref[...]).astype(f32)                          # (T, V)
    word = jnp.dot(onehot, wemb_ref[...], preferred_element_type=f32)  # (T, H)
    pos = jnp.concatenate([pemb_ref[0:seq, :]] * batch, axis=0)     # (T, H)
    x = word + pos + temb_ref[0:1, :]                               # token_type_ids == 0
    h = _layernorm(x, emb_g_ref[...], emb_b_ref[...])               # (T, H) f32

    # --- additive mask bias: computed once, hoisted out of layer/head loops ---
    bias3 = (1.0 - mask_ref[...].astype(f32)) * (-1e9)              # (B, 1, S)

    # --- encoder layers (static unroll; weights stay resident in VMEM) ---
    for l in range(num_layers):
        h_bf = h.astype(bf16)                                       # one cast / layer
        # fused QKV projection: one (T,H)x(H,3H) MXU pass instead of three.
        qkv = jnp.dot(h_bf, wqkv_ref[l],
                      preferred_element_type=f32) + bqkv_ref[l]     # (T, 3H)
        qkv_b = qkv.astype(bf16).reshape(batch, seq, 3 * H)         # one cast / layer

        heads = []
        for hd in range(num_heads):
            q = qkv_b[:, :, hd * dH:(hd + 1) * dH]                  # (B, S, dH)
            k = qkv_b[:, :, H + hd * dH:H + (hd + 1) * dH]
            v = qkv_b[:, :, 2 * H + hd * dH:2 * H + (hd + 1) * dH]
            # batched over B: one q@k^T and one p@v per head (no transposes).
            s = jnp.einsum('bqd,bkd->bqk', q, k,
                           preferred_element_type=f32)              # (B, S, S)
            s = s * scale + bias3
            s = s - jnp.max(s, axis=-1, keepdims=True)
            p = jnp.exp(s)
            p = p * pl.reciprocal(jnp.sum(p, axis=-1, keepdims=True), approx=True)
            heads.append(jnp.einsum('bqk,bkd->bqd', p.astype(bf16), v,
                                    preferred_element_type=f32))    # (B, S, dH)
        ctx = jnp.concatenate(heads, axis=-1).reshape(T, H)         # (T, H)

        # output projection + residual + LN1 (fused epilogue)
        attn_out = jnp.dot(ctx.astype(bf16), wo_ref[l],
                           preferred_element_type=f32) + bo_ref[l]
        h = _layernorm(attn_out + h, ln1g_ref[l], ln1b_ref[l])

        # FFN + residual + LN2 (fused epilogue)
        ff = jnp.dot(h.astype(bf16), w1_ref[l],
                     preferred_element_type=f32) + b1_ref[l]
        ff = _gelu(ff)
        ff = jnp.dot(ff.astype(bf16), w2_ref[l],
                     preferred_element_type=f32) + b2_ref[l]
        h = _layernorm(ff + h, ln2g_ref[l], ln2b_ref[l])

    # --- pooler (tanh on [CLS]) + classifier + sigmoid, all in-kernel ---
    # TODO(synk): at larger B replace this 2-row gather with a strided sublane read.
    cls = jnp.concatenate([h[b * seq:b * seq + 1, :] for b in range(batch)],
                          axis=0)                                    # (B, H)
    pooled = jnp.tanh(jnp.dot(cls.astype(bf16), poolw_ref[...],
                              preferred_element_type=f32) + poolb_ref[...])
    logits = jnp.dot(pooled.astype(bf16), fcw_ref[...],
                     preferred_element_type=f32) + fcb_ref[...]
    out_ref[...] = jax.nn.sigmoid(logits).astype(out_ref.dtype)


# ------------------------------ parameters ----------------------------------

def init_params(key, *, vocab=128, max_pos=16, type_vocab=2,
                hidden=32, intermediate=64, num_heads=4, num_layers=2,
                num_classes=1):
    def nrm(k, shape, dtype=jnp.float32):
        return (0.02 * jax.random.normal(k, shape)).astype(dtype)

    keys = iter(jax.random.split(key, 32))
    L, H, I, C = num_layers, hidden, intermediate, num_classes
    bf16 = jnp.bfloat16
    return {
        "num_heads": num_heads,
        "word_emb": nrm(next(keys), (vocab, H)),
        "pos_emb": nrm(next(keys), (max_pos, H)),
        "type_emb": nrm(next(keys), (type_vocab, H)),
        "emb_ln_g": jnp.ones((1, H), jnp.float32),
        "emb_ln_b": jnp.zeros((1, H), jnp.float32),
        # per-layer weights stacked on a leading L axis; matmul weights bf16
        # (MXU-native), biases / LN params f32.
        "wqkv": nrm(next(keys), (L, H, 3 * H), bf16),
        "bqkv": jnp.zeros((L, 1, 3 * H), jnp.float32),
        "wo": nrm(next(keys), (L, H, H), bf16),
        "bo": jnp.zeros((L, 1, H), jnp.float32),
        "ln1_g": jnp.ones((L, 1, H), jnp.float32),
        "ln1_b": jnp.zeros((L, 1, H), jnp.float32),
        "w1": nrm(next(keys), (L, H, I), bf16),
        "b1": jnp.zeros((L, 1, I), jnp.float32),
        "w2": nrm(next(keys), (L, I, H), bf16),
        "b2": jnp.zeros((L, 1, H), jnp.float32),
        "ln2_g": jnp.ones((L, 1, H), jnp.float32),
        "ln2_b": jnp.zeros((L, 1, H), jnp.float32),
        "pool_w": nrm(next(keys), (H, H), bf16),
        "pool_b": jnp.zeros((1, H), jnp.float32),
        "fc_w": nrm(next(keys), (H, C), bf16),
        "fc_b": jnp.zeros((1, C), jnp.float32),
    }


# ------------------------------ forward pass ---------------------------------

def sentence_classifier_forward(params, input_ids, attention_mask):
    B, S = input_ids.shape
    V, H = params["word_emb"].shape
    L = params["wqkv"].shape[0]
    nH = params["num_heads"]
    C = params["fc_w"].shape[1]

    # the only wrapper-side work: trivial reshapes of 16-element int arrays
    # (embedding gather / pos-type add / mask bias all happen in-kernel now).
    ids_col = input_ids.reshape(B * S, 1).astype(jnp.int32)
    mask3 = attention_mask.reshape(B, 1, S).astype(jnp.int32)

    operands = (
        ids_col, mask3,
        params["word_emb"], params["pos_emb"], params["type_emb"],
        params["emb_ln_g"], params["emb_ln_b"],
        params["wqkv"], params["bqkv"], params["wo"], params["bo"],
        params["ln1_g"], params["ln1_b"],
        params["w1"], params["b1"], params["w2"], params["b2"],
        params["ln2_g"], params["ln2_b"],
        params["pool_w"], params["pool_b"],
        params["fc_w"], params["fc_b"],
    )

    def full_spec(a):
        nd = a.ndim
        return pl.BlockSpec(a.shape, lambda _nd=nd: (0,) * _nd)

    kernel = functools.partial(
        _fused_forward_kernel,
        num_layers=L, num_heads=nH, batch=B, seq=S, vocab=V)

    return pl.pallas_call(
        kernel,
        out_shape=jax.ShapeDtypeStruct((B, C), jnp.float32),
        in_specs=[full_spec(a) for a in operands],
        out_specs=pl.BlockSpec((B, C), lambda: (0, 0)),
    )(*operands)


# --------------------------------- main --------------------------------------

if __name__ == "__main__":
    key = jax.random.PRNGKey(0)
    k_param, k_ids, k_mask = jax.random.split(key, 3)

    B, S = 2, 8
    params = init_params(k_param)

    input_ids = jax.random.randint(k_ids, (B, S), 0, 128, dtype=jnp.int32)
    # first 6 tokens real, last 2 padded (like pad_sequence output)
    attention_mask = jnp.concatenate(
        [jnp.ones((B, 6), jnp.int32), jnp.zeros((B, 2), jnp.int32)], axis=1)

    out = sentence_classifier_forward(params, input_ids, attention_mask)
    out = jax.block_until_ready(out)
    assert out.shape == (B, 1)
    assert bool(jnp.all((out >= 0.0) & (out <= 1.0)))
    print("KERNEL_OK")
</pallas_src>

<mosaic_0001>
module attributes {stable_mosaic.version = 11 : i64} {
  func.func @_fused_forward_kernel(%arg0: memref<16x1xi32, #tpu.memory_space<vmem>>, %arg1: memref<2x1x8xi32, #tpu.memory_space<vmem>>, %arg2: memref<128x32xf32, #tpu.memory_space<vmem>>, %arg3: memref<16x32xf32, #tpu.memory_space<vmem>>, %arg4: memref<2x32xf32, #tpu.memory_space<vmem>>, %arg5: memref<1x32xf32, #tpu.memory_space<vmem>>, %arg6: memref<1x32xf32, #tpu.memory_space<vmem>>, %arg7: memref<2x32x96xbf16, #tpu.memory_space<vmem>>, %arg8: memref<2x1x96xf32, #tpu.memory_space<vmem>>, %arg9: memref<2x32x32xbf16, #tpu.memory_space<vmem>>, %arg10: memref<2x1x32xf32, #tpu.memory_space<vmem>>, %arg11: memref<2x1x32xf32, #tpu.memory_space<vmem>>, %arg12: memref<2x1x32xf32, #tpu.memory_space<vmem>>, %arg13: memref<2x32x64xbf16, #tpu.memory_space<vmem>>, %arg14: memref<2x1x64xf32, #tpu.memory_space<vmem>>, %arg15: memref<2x64x32xbf16, #tpu.memory_space<vmem>>, %arg16: memref<2x1x32xf32, #tpu.memory_space<vmem>>, %arg17: memref<2x1x32xf32, #tpu.memory_space<vmem>>, %arg18: memref<2x1x32xf32, #tpu.memory_space<vmem>>, %arg19: memref<32x32xbf16, #tpu.memory_space<vmem>>, %arg20: memref<1x32xf32, #tpu.memory_space<vmem>>, %arg21: memref<32x1xbf16, #tpu.memory_space<vmem>>, %arg22: memref<1x1xf32, #tpu.memory_space<vmem>>, %arg23: memref<2x1xf32, #tpu.memory_space<vmem>>) attributes {dimension_semantics = [], scalar_prefetch = 0 : i64, scratch_operands = 0 : i64, tpu.core_type = #tpu.core_type<tc>} {
    %0 = tpu.iota {dimensions = array<i32: 1>} : vector<16x128xi32>
    %c0 = arith.constant 0 : index
    %c0_0 = arith.constant 0 : index
    %1 = vector.load %arg0[%c0, %c0_0] : memref<16x1xi32, #tpu.memory_space<vmem>>, vector<16x1xi32>
    %2 = vector.broadcast %1 : vector<16x1xi32> to vector<16x128xi32>
    %3 = arith.cmpi eq, %0, %2 : vector<16x128xi32>
    %4 = arith.extui %3 : vector<16x128xi1> to vector<16x128xi32>
    %5 = arith.sitofp %4 : vector<16x128xi32> to vector<16x128xf32>
    %c0_1 = arith.constant 0 : index
    %c0_2 = arith.constant 0 : index
    %6 = vector.load %arg2[%c0_1, %c0_2] : memref<128x32xf32, #tpu.memory_space<vmem>>, vector<128x32xf32>
    %cst = arith.constant dense<0.000000e+00> : vector<16x32xf32>
    %7 = tpu.matmul %5, %6, %cst {dimension_numbers = #tpu.dot_dimension_numbers<[1], [0], [0], [1], [0, 0, 1, 1], [], []>} : vector<16x128xf32>, vector<128x32xf32>, vector<16x32xf32> -> vector<16x32xf32>
    %c0_3 = arith.constant 0 : index
    %c0_4 = arith.constant 0 : index
    %8 = vector.load %arg3[%c0_3, %c0_4] : memref<16x32xf32, #tpu.memory_space<vmem>>, vector<8x32xf32>
    %9 = tpu.concatenate %8, %8 in 0 : vector<8x32xf32>, vector<8x32xf32> -> vector<16x32xf32>
    %10 = arith.addf %7, %9 : vector<16x32xf32>
    %c0_5 = arith.constant 0 : index
    %c0_6 = arith.constant 0 : index
    %11 = vector.load %arg4[%c0_5, %c0_6] : memref<2x32xf32, #tpu.memory_space<vmem>>, vector<1x32xf32>
    %12 = vector.broadcast %11 : vector<1x32xf32> to vector<16x32xf32>
    %13 = arith.addf %10, %12 : vector<16x32xf32>
    %c0_7 = arith.constant 0 : index
    %c0_8 = arith.constant 0 : index
    %14 = vector.load %arg5[%c0_7, %c0_8] : memref<1x32xf32, #tpu.memory_space<vmem>>, vector<1x32xf32>
    %c0_9 = arith.constant 0 : index
    %c0_10 = arith.constant 0 : index
    %15 = vector.load %arg6[%c0_9, %c0_10] : memref<1x32xf32, #tpu.memory_space<vmem>>, vector<1x32xf32>
    %cst_11 = arith.constant dense<0.000000e+00> : vector<16xf32>
    %16 = vector.multi_reduction <add>, %13, %cst_11 [1] : vector<16x32xf32> to vector<16xf32>
    %17 = vector.shape_cast %16 : vector<16xf32> to vector<16x1xf32>
    %cst_12 = arith.constant 3.200000e+01 : f32
    %18 = vector.broadcast %cst_12 : f32 to vector<16x1xf32>
    %19 = arith.divf %17, %18 : vector<16x1xf32>
    %20 = vector.broadcast %19 : vector<16x1xf32> to vector<16x32xf32>
    %21 = arith.subf %13, %20 : vector<16x32xf32>
    %22 = arith.mulf %21, %21 : vector<16x32xf32>
    %cst_13 = arith.constant dense<0.000000e+00> : vector<16xf32>
    %23 = vector.multi_reduction <add>, %22, %cst_13 [1] : vector<16x32xf32> to vector<16xf32>
    %24 = vector.shape_cast %23 : vector<16xf32> to vector<16x1xf32>
    %cst_14 = arith.constant 3.200000e+01 : f32
    %25 = vector.broadcast %cst_14 : f32 to vector<16x1xf32>
    %26 = arith.divf %24, %25 : vector<16x1xf32>
    %27 = vector.broadcast %19 : vector<16x1xf32> to vector<16x32xf32>
    %28 = arith.subf %13, %27 : vector<16x32xf32>
    %cst_15 = arith.constant 9.99999996E-13 : f32
    %29 = vector.broadcast %cst_15 : f32 to vector<16x1xf32>
    %30 = arith.addf %26, %29 : vector<16x1xf32>
    %31 = math.rsqrt %30 : vector<16x1xf32>
    %32 = vector.broadcast %31 : vector<16x1xf32> to vector<16x32xf32>
    %33 = arith.mulf %28, %32 : vector<16x32xf32>
    %34 = vector.broadcast %14 : vector<1x32xf32> to vector<16x32xf32>
    %35 = arith.mulf %33, %34 : vector<16x32xf32>
    %36 = vector.broadcast %15 : vector<1x32xf32> to vector<16x32xf32>
    %37 = arith.addf %35, %36 : vector<16x32xf32>
    %c0_16 = arith.constant 0 : index
    %c0_17 = arith.constant 0 : index
    %c0_18 = arith.constant 0 : index
    %38 = vector.load %arg1[%c0_16, %c0_17, %c0_18] : memref<2x1x8xi32, #tpu.memory_space<vmem>>, vector<2x1x8xi32>
    %39 = arith.sitofp %38 : vector<2x1x8xi32> to vector<2x1x8xf32>
    %cst_19 = arith.constant 1.000000e+00 : f32
    %40 = vector.broadcast %cst_19 : f32 to vector<2x1x8xf32>
    %41 = arith.subf %40, %39 : vector<2x1x8xf32>
    %cst_20 = arith.constant -1.000000e+09 : f32
    %42 = vector.broadcast %cst_20 : f32 to vector<2x1x8xf32>
    %43 = arith.mulf %41, %42 : vector<2x1x8xf32>
    %44 = arith.truncf %37 : vector<16x32xf32> to vector<16x32xbf16>
    %c0_21 = arith.constant 0 : index
    %c0_22 = arith.constant 0 : index
    %c0_23 = arith.constant 0 : index
    %45 = vector.load %arg7[%c0_21, %c0_22, %c0_23] : memref<2x32x96xbf16, #tpu.memory_space<vmem>>, vector<1x32x96xbf16>
    %46 = vector.shape_cast %45 : vector<1x32x96xbf16> to vector<32x96xbf16>
    %cst_24 = arith.constant dense<0.000000e+00> : vector<16x96xf32>
    %47 = tpu.matmul %44, %46, %cst_24 {dimension_numbers = #tpu.dot_dimension_numbers<[1], [0], [0], [1], [0, 0, 1, 1], [], []>} : vector<16x32xbf16>, vector<32x96xbf16>, vector<16x96xf32> -> vector<16x96xf32>
    %c0_25 = arith.constant 0 : index
    %c0_26 = arith.constant 0 : index
    %c0_27 = arith.constant 0 : index
    %48 = vector.load %arg8[%c0_25, %c0_26, %c0_27] : memref<2x1x96xf32, #tpu.memory_space<vmem>>, vector<1x1x96xf32>
    %49 = vector.shape_cast %48 : vector<1x1x96xf32> to vector<1x96xf32>
    %50 = vector.broadcast %49 : vector<1x96xf32> to vector<16x96xf32>
    %51 = arith.addf %47, %50 : vector<16x96xf32>
    %52 = arith.truncf %51 : vector<16x96xf32> to vector<16x96xbf16>
    %53 = vector.shape_cast %52 : vector<16x96xbf16> to vector<2x8x96xbf16>
    %54 = vector.extract_strided_slice %53 {offsets = [0, 0, 0], sizes = [2, 8, 8], strides = [1, 1, 1]} : vector<2x8x96xbf16> to vector<2x8x8xbf16>
    %55 = vector.extract_strided_slice %53 {offsets = [0, 0, 32], sizes = [2, 8, 8], strides = [1, 1, 1]} : vector<2x8x96xbf16> to vector<2x8x8xbf16>
    %56 = vector.extract_strided_slice %53 {offsets = [0, 0, 64], sizes = [2, 8, 8], strides = [1, 1, 1]} : vector<2x8x96xbf16> to vector<2x8x8xbf16>
    "tpu.trace_start"() <{level = 10 : i32, message = "bqd,bkd->bqk"}> : () -> ()
    %cst_28 = arith.constant dense<0.000000e+00> : vector<2x8x8xf32>
    %57 = tpu.matmul %54, %55, %cst_28 {dimension_numbers = #tpu.dot_dimension_numbers<[2], [2], [1], [1], [0, 0, 0, 1, 1, 1], [0], [0]>} : vector<2x8x8xbf16>, vector<2x8x8xbf16>, vector<2x8x8xf32> -> vector<2x8x8xf32>
    "tpu.trace_stop"() : () -> ()
    %cst_29 = arith.constant 0.353553385 : f32
    %58 = vector.broadcast %cst_29 : f32 to vector<2x8x8xf32>
    %59 = arith.mulf %57, %58 : vector<2x8x8xf32>
    %60 = vector.broadcast %43 : vector<2x1x8xf32> to vector<2x8x8xf32>
    %61 = arith.addf %59, %60 : vector<2x8x8xf32>
    %cst_30 = arith.constant dense<0xFF800000> : vector<2x8xf32>
    %62 = vector.multi_reduction <maximumf>, %61, %cst_30 [2] : vector<2x8x8xf32> to vector<2x8xf32>
    %63 = vector.shape_cast %62 : vector<2x8xf32> to vector<2x8x1xf32>
    %64 = vector.broadcast %63 : vector<2x8x1xf32> to vector<2x8x8xf32>
    %65 = arith.subf %61, %64 : vector<2x8x8xf32>
    %66 = math.exp %65 : vector<2x8x8xf32>
    %cst_31 = arith.constant dense<0.000000e+00> : vector<2x8xf32>
    %67 = vector.multi_reduction <add>, %66, %cst_31 [2] : vector<2x8x8xf32> to vector<2x8xf32>
    %68 = vector.shape_cast %67 : vector<2x8xf32> to vector<2x8x1xf32>
    %69 = tpu.reciprocal %68 {approx = true} : vector<2x8x1xf32> -> vector<2x8x1xf32>
    %70 = vector.broadcast %69 : vector<2x8x1xf32> to vector<2x8x8xf32>
    %71 = arith.mulf %66, %70 : vector<2x8x8xf32>
    %72 = arith.truncf %71 : vector<2x8x8xf32> to vector<2x8x8xbf16>
    "tpu.trace_start"() <{level = 10 : i32, message = "bqk,bkd->bqd"}> : () -> ()
    %cst_32 = arith.constant dense<0.000000e+00> : vector<2x8x8xf32>
    %73 = tpu.matmul %72, %56, %cst_32 {dimension_numbers = #tpu.dot_dimension_numbers<[2], [1], [1], [2], [0, 0, 0, 1, 1, 2], [0], [0]>} : vector<2x8x8xbf16>, vector<2x8x8xbf16>, vector<2x8x8xf32> -> vector<2x8x8xf32>
    "tpu.trace_stop"() : () -> ()
    %74 = vector.extract_strided_slice %53 {offsets = [0, 0, 8], sizes = [2, 8, 8], strides = [1, 1, 1]} : vector<2x8x96xbf16> to vector<2x8x8xbf16>
    %75 = vector.extract_strided_slice %53 {offsets = [0, 0, 40], sizes = [2, 8, 8], strides = [1, 1, 1]} : vector<2x8x96xbf16> to vector<2x8x8xbf16>
    %76 = vector.extract_strided_slice %53 {offsets = [0, 0, 72], sizes = [2, 8, 8], strides = [1, 1, 1]} : vector<2x8x96xbf16> to vector<2x8x8xbf16>
    "tpu.trace_start"() <{level = 10 : i32, message = "bqd,bkd->bqk"}> : () -> ()
    %cst_33 = arith.constant dense<0.000000e+00> : vector<2x8x8xf32>
    %77 = tpu.matmul %74, %75, %cst_33 {dimension_numbers = #tpu.dot_dimension_numbers<[2], [2], [1], [1], [0, 0, 0, 1, 1, 1], [0], [0]>} : vector<2x8x8xbf16>, vector<2x8x8xbf16>, vector<2x8x8xf32> -> vector<2x8x8xf32>
    "tpu.trace_stop"() : () -> ()
    %cst_34 = arith.constant 0.353553385 : f32
    %78 = vector.broadcast %cst_34 : f32 to vector<2x8x8xf32>
    %79 = arith.mulf %77, %78 : vector<2x8x8xf32>
    %80 = vector.broadcast %43 : vector<2x1x8xf32> to vector<2x8x8xf32>
    %81 = arith.addf %79, %80 : vector<2x8x8xf32>
    %cst_35 = arith.constant dense<0xFF800000> : vector<2x8xf32>
    %82 = vector.multi_reduction <maximumf>, %81, %cst_35 [2] : vector<2x8x8xf32> to vector<2x8xf32>
    %83 = vector.shape_cast %82 : vector<2x8xf32> to vector<2x8x1xf32>
    %84 = vector.broadcast %83 : vector<2x8x1xf32> to vector<2x8x8xf32>
    %85 = arith.subf %81, %84 : vector<2x8x8xf32>
    %86 = math.exp %85 : vector<2x8x8xf32>
    %cst_36 = arith.constant dense<0.000000e+00> : vector<2x8xf32>
    %87 = vector.multi_reduction <add>, %86, %cst_36 [2] : vector<2x8x8xf32> to vector<2x8xf32>
    %88 = vector.shape_cast %87 : vector<2x8xf32> to vector<2x8x1xf32>
    %89 = tpu.reciprocal %88 {approx = true} : vector<2x8x1xf32> -> vector<2x8x1xf32>
    %90 = vector.broadcast %89 : vector<2x8x1xf32> to vector<2x8x8xf32>
    %91 = arith.mulf %86, %90 : vector<2x8x8xf32>
    %92 = arith.truncf %91 : vector<2x8x8xf32> to vector<2x8x8xbf16>
    "tpu.trace_start"() <{level = 10 : i32, message = "bqk,bkd->bqd"}> : () -> ()
    %cst_37 = arith.constant dense<0.000000e+00> : vector<2x8x8xf32>
    %93 = tpu.matmul %92, %76, %cst_37 {dimension_numbers = #tpu.dot_dimension_numbers<[2], [1], [1], [2], [0, 0, 0, 1, 1, 2], [0], [0]>} : vector<2x8x8xbf16>, vector<2x8x8xbf16>, vector<2x8x8xf32> -> vector<2x8x8xf32>
    "tpu.trace_stop"() : () -> ()
    %94 = vector.extract_strided_slice %53 {offsets = [0, 0, 16], sizes = [2, 8, 8], strides = [1, 1, 1]} : vector<2x8x96xbf16> to vector<2x8x8xbf16>
    %95 = vector.extract_strided_slice %53 {offsets = [0, 0, 48], sizes = [2, 8, 8], strides = [1, 1, 1]} : vector<2x8x96xbf16> to vector<2x8x8xbf16>
    %96 = vector.extract_strided_slice %53 {offsets = [0, 0, 80], sizes = [2, 8, 8], strides = [1, 1, 1]} : vector<2x8x96xbf16> to vector<2x8x8xbf16>
    "tpu.trace_start"() <{level = 10 : i32, message = "bqd,bkd->bqk"}> : () -> ()
    %cst_38 = arith.constant dense<0.000000e+00> : vector<2x8x8xf32>
    %97 = tpu.matmul %94, %95, %cst_38 {dimension_numbers = #tpu.dot_dimension_numbers<[2], [2], [1], [1], [0, 0, 0, 1, 1, 1], [0], [0]>} : vector<2x8x8xbf16>, vector<2x8x8xbf16>, vector<2x8x8xf32> -> vector<2x8x8xf32>
    "tpu.trace_stop"() : () -> ()
    %cst_39 = arith.constant 0.353553385 : f32
    %98 = vector.broadcast %cst_39 : f32 to vector<2x8x8xf32>
    %99 = arith.mulf %97, %98 : vector<2x8x8xf32>
    %100 = vector.broadcast %43 : vector<2x1x8xf32> to vector<2x8x8xf32>
    %101 = arith.addf %99, %100 : vector<2x8x8xf32>
    %cst_40 = arith.constant dense<0xFF800000> : vector<2x8xf32>
    %102 = vector.multi_reduction <maximumf>, %101, %cst_40 [2] : vector<2x8x8xf32> to vector<2x8xf32>
    %103 = vector.shape_cast %102 : vector<2x8xf32> to vector<2x8x1xf32>
    %104 = vector.broadcast %103 : vector<2x8x1xf32> to vector<2x8x8xf32>
    %105 = arith.subf %101, %104 : vector<2x8x8xf32>
    %106 = math.exp %105 : vector<2x8x8xf32>
    %cst_41 = arith.constant dense<0.000000e+00> : vector<2x8xf32>
    %107 = vector.multi_reduction <add>, %106, %cst_41 [2] : vector<2x8x8xf32> to vector<2x8xf32>
    %108 = vector.shape_cast %107 : vector<2x8xf32> to vector<2x8x1xf32>
    %109 = tpu.reciprocal %108 {approx = true} : vector<2x8x1xf32> -> vector<2x8x1xf32>
    %110 = vector.broadcast %109 : vector<2x8x1xf32> to vector<2x8x8xf32>
    %111 = arith.mulf %106, %110 : vector<2x8x8xf32>
    %112 = arith.truncf %111 : vector<2x8x8xf32> to vector<2x8x8xbf16>
    "tpu.trace_start"() <{level = 10 : i32, message = "bqk,bkd->bqd"}> : () -> ()
    %cst_42 = arith.constant dense<0.000000e+00> : vector<2x8x8xf32>
    %113 = tpu.matmul %112, %96, %cst_42 {dimension_numbers = #tpu.dot_dimension_numbers<[2], [1], [1], [2], [0, 0, 0, 1, 1, 2], [0], [0]>} : vector<2x8x8xbf16>, vector<2x8x8xbf16>, vector<2x8x8xf32> -> vector<2x8x8xf32>
    "tpu.trace_stop"() : () -> ()
    %114 = vector.extract_strided_slice %53 {offsets = [0, 0, 24], sizes = [2, 8, 8], strides = [1, 1, 1]} : vector<2x8x96xbf16> to vector<2x8x8xbf16>
    %115 = vector.extract_strided_slice %53 {offsets = [0, 0, 56], sizes = [2, 8, 8], strides = [1, 1, 1]} : vector<2x8x96xbf16> to vector<2x8x8xbf16>
    %116 = vector.extract_strided_slice %53 {offsets = [0, 0, 88], sizes = [2, 8, 8], strides = [1, 1, 1]} : vector<2x8x96xbf16> to vector<2x8x8xbf16>
    "tpu.trace_start"() <{level = 10 : i32, message = "bqd,bkd->bqk"}> : () -> ()
    %cst_43 = arith.constant dense<0.000000e+00> : vector<2x8x8xf32>
    %117 = tpu.matmul %114, %115, %cst_43 {dimension_numbers = #tpu.dot_dimension_numbers<[2], [2], [1], [1], [0, 0, 0, 1, 1, 1], [0], [0]>} : vector<2x8x8xbf16>, vector<2x8x8xbf16>, vector<2x8x8xf32> -> vector<2x8x8xf32>
    "tpu.trace_stop"() : () -> ()
    %cst_44 = arith.constant 0.353553385 : f32
    %118 = vector.broadcast %cst_44 : f32 to vector<2x8x8xf32>
    %119 = arith.mulf %117, %118 : vector<2x8x8xf32>
    %120 = vector.broadcast %43 : vector<2x1x8xf32> to vector<2x8x8xf32>
    %121 = arith.addf %119, %120 : vector<2x8x8xf32>
    %cst_45 = arith.constant dense<0xFF800000> : vector<2x8xf32>
    %122 = vector.multi_reduction <maximumf>, %121, %cst_45 [2] : vector<2x8x8xf32> to vector<2x8xf32>
    %123 = vector.shape_cast %122 : vector<2x8xf32> to vector<2x8x1xf32>
    %124 = vector.broadcast %123 : vector<2x8x1xf32> to vector<2x8x8xf32>
    %125 = arith.subf %121, %124 : vector<2x8x8xf32>
    %126 = math.exp %125 : vector<2x8x8xf32>
    %cst_46 = arith.constant dense<0.000000e+00> : vector<2x8xf32>
    %127 = vector.multi_reduction <add>, %126, %cst_46 [2] : vector<2x8x8xf32> to vector<2x8xf32>
    %128 = vector.shape_cast %127 : vector<2x8xf32> to vector<2x8x1xf32>
    %129 = tpu.reciprocal %128 {approx = true} : vector<2x8x1xf32> -> vector<2x8x1xf32>
    %130 = vector.broadcast %129 : vector<2x8x1xf32> to vector<2x8x8xf32>
    %131 = arith.mulf %126, %130 : vector<2x8x8xf32>
    %132 = arith.truncf %131 : vector<2x8x8xf32> to vector<2x8x8xbf16>
    "tpu.trace_start"() <{level = 10 : i32, message = "bqk,bkd->bqd"}> : () -> ()
    %cst_47 = arith.constant dense<0.000000e+00> : vector<2x8x8xf32>
    %133 = tpu.matmul %132, %116, %cst_47 {dimension_numbers = #tpu.dot_dimension_numbers<[2], [1], [1], [2], [0, 0, 0, 1, 1, 2], [0], [0]>} : vector<2x8x8xbf16>, vector<2x8x8xbf16>, vector<2x8x8xf32> -> vector<2x8x8xf32>
    "tpu.trace_stop"() : () -> ()
    %134 = tpu.concatenate %73, %93, %113, %133 in 2 : vector<2x8x8xf32>, vector<2x8x8xf32>, vector<2x8x8xf32>, vector<2x8x8xf32> -> vector<2x8x32xf32>
    %135 = vector.shape_cast %134 : vector<2x8x32xf32> to vector<16x32xf32>
    %136 = arith.truncf %135 : vector<16x32xf32> to vector<16x32xbf16>
    %c0_48 = arith.constant 0 : index
    %c0_49 = arith.constant 0 : index
    %c0_50 = arith.constant 0 : index
    %137 = vector.load %arg9[%c0_48, %c0_49, %c0_50] : memref<2x32x32xbf16, #tpu.memory_space<vmem>>, vector<1x32x32xbf16>
    %138 = vector.shape_cast %137 : vector<1x32x32xbf16> to vector<32x32xbf16>
    %cst_51 = arith.constant dense<0.000000e+00> : vector<16x32xf32>
    %139 = tpu.matmul %136, %138, %cst_51 {dimension_numbers = #tpu.dot_dimension_numbers<[1], [0], [0], [1], [0, 0, 1, 1], [], []>} : vector<16x32xbf16>, vector<32x32xbf16>, vector<16x32xf32> -> vector<16x32xf32>
    %c0_52 = arith.constant 0 : index
    %c0_53 = arith.constant 0 : index
    %c0_54 = arith.constant 0 : index
    %140 = vector.load %arg10[%c0_52, %c0_53, %c0_54] : memref<2x1x32xf32, #tpu.memory_space<vmem>>, vector<1x1x32xf32>
    %141 = vector.shape_cast %140 : vector<1x1x32xf32> to vector<1x32xf32>
    %142 = vector.broadcast %141 : vector<1x32xf32> to vector<16x32xf32>
    %143 = arith.addf %139, %142 : vector<16x32xf32>
    %144 = arith.addf %143, %37 : vector<16x32xf32>
    %c0_55 = arith.constant 0 : index
    %c0_56 = arith.constant 0 : index
    %c0_57 = arith.constant 0 : index
    %145 = vector.load %arg11[%c0_55, %c0_56, %c0_57] : memref<2x1x32xf32, #tpu.memory_space<vmem>>, vector<1x1x32xf32>
    %146 = vector.shape_cast %145 : vector<1x1x32xf32> to vector<1x32xf32>
    %c0_58 = arith.constant 0 : index
    %c0_59 = arith.constant 0 : index
    %c0_60 = arith.constant 0 : index
    %147 = vector.load %arg12[%c0_58, %c0_59, %c0_60] : memref<2x1x32xf32, #tpu.memory_space<vmem>>, vector<1x1x32xf32>
    %148 = vector.shape_cast %147 : vector<1x1x32xf32> to vector<1x32xf32>
    %cst_61 = arith.constant dense<0.000000e+00> : vector<16xf32>
    %149 = vector.multi_reduction <add>, %144, %cst_61 [1] : vector<16x32xf32> to vector<16xf32>
    %150 = vector.shape_cast %149 : vector<16xf32> to vector<16x1xf32>
    %cst_62 = arith.constant 3.200000e+01 : f32
    %151 = vector.broadcast %cst_62 : f32 to vector<16x1xf32>
    %152 = arith.divf %150, %151 : vector<16x1xf32>
    %153 = vector.broadcast %152 : vector<16x1xf32> to vector<16x32xf32>
    %154 = arith.subf %144, %153 : vector<16x32xf32>
    %155 = arith.mulf %154, %154 : vector<16x32xf32>
    %cst_63 = arith.constant dense<0.000000e+00> : vector<16xf32>
    %156 = vector.multi_reduction <add>, %155, %cst_63 [1] : vector<16x32xf32> to vector<16xf32>
    %157 = vector.shape_cast %156 : vector<16xf32> to vector<16x1xf32>
    %cst_64 = arith.constant 3.200000e+01 : f32
    %158 = vector.broadcast %cst_64 : f32 to vector<16x1xf32>
    %159 = arith.divf %157, %158 : vector<16x1xf32>
    %160 = vector.broadcast %152 : vector<16x1xf32> to vector<16x32xf32>
    %161 = arith.subf %144, %160 : vector<16x32xf32>
    %cst_65 = arith.constant 9.99999996E-13 : f32
    %162 = vector.broadcast %cst_65 : f32 to vector<16x1xf32>
    %163 = arith.addf %159, %162 : vector<16x1xf32>
    %164 = math.rsqrt %163 : vector<16x1xf32>
    %165 = vector.broadcast %164 : vector<16x1xf32> to vector<16x32xf32>
    %166 = arith.mulf %161, %165 : vector<16x32xf32>
    %167 = vector.broadcast %146 : vector<1x32xf32> to vector<16x32xf32>
    %168 = arith.mulf %166, %167 : vector<16x32xf32>
    %169 = vector.broadcast %148 : vector<1x32xf32> to vector<16x32xf32>
    %170 = arith.addf %168, %169 : vector<16x32xf32>
    %171 = arith.truncf %170 : vector<16x32xf32> to vector<16x32xbf16>
    %c0_66 = arith.constant 0 : index
    %c0_67 = arith.constant 0 : index
    %c0_68 = arith.constant 0 : index
    %172 = vector.load %arg13[%c0_66, %c0_67, %c0_68] : memref<2x32x64xbf16, #tpu.memory_space<vmem>>, vector<1x32x64xbf16>
    %173 = vector.shape_cast %172 : vector<1x32x64xbf16> to vector<32x64xbf16>
    %cst_69 = arith.constant dense<0.000000e+00> : vector<16x64xf32>
    %174 = tpu.matmul %171, %173, %cst_69 {dimension_numbers = #tpu.dot_dimension_numbers<[1], [0], [0], [1], [0, 0, 1, 1], [], []>} : vector<16x32xbf16>, vector<32x64xbf16>, vector<16x64xf32> -> vector<16x64xf32>
    %c0_70 = arith.constant 0 : index
    %c0_71 = arith.constant 0 : index
    %c0_72 = arith.constant 0 : index
    %175 = vector.load %arg14[%c0_70, %c0_71, %c0_72] : memref<2x1x64xf32, #tpu.memory_space<vmem>>, vector<1x1x64xf32>
    %176 = vector.shape_cast %175 : vector<1x1x64xf32> to vector<1x64xf32>
    %177 = vector.broadcast %176 : vector<1x64xf32> to vector<16x64xf32>
    %178 = arith.addf %174, %177 : vector<16x64xf32>
    %cst_73 = arith.constant 5.000000e-01 : f32
    %179 = vector.broadcast %cst_73 : f32 to vector<16x64xf32>
    %180 = arith.mulf %179, %178 : vector<16x64xf32>
    %cst_74 = arith.constant 4.471500e-02 : f32
    %181 = vector.broadcast %cst_74 : f32 to vector<16x64xf32>
    %182 = arith.mulf %181, %178 : vector<16x64xf32>
    %183 = arith.mulf %182, %178 : vector<16x64xf32>
    %184 = arith.mulf %183, %178 : vector<16x64xf32>
    %185 = arith.addf %178, %184 : vector<16x64xf32>
    %cst_75 = arith.constant 0.797884583 : f32
    %186 = vector.broadcast %cst_75 : f32 to vector<16x64xf32>
    %187 = arith.mulf %186, %185 : vector<16x64xf32>
    %188 = math.tanh %187 : vector<16x64xf32>
    %cst_76 = arith.constant 1.000000e+00 : f32
    %189 = vector.broadcast %cst_76 : f32 to vector<16x64xf32>
    %190 = arith.addf %189, %188 : vector<16x64xf32>
    %191 = arith.mulf %180, %190 : vector<16x64xf32>
    %192 = arith.truncf %191 : vector<16x64xf32> to vector<16x64xbf16>
    %c0_77 = arith.constant 0 : index
    %c0_78 = arith.constant 0 : index
    %c0_79 = arith.constant 0 : index
    %193 = vector.load %arg15[%c0_77, %c0_78, %c0_79] : memref<2x64x32xbf16, #tpu.memory_space<vmem>>, vector<1x64x32xbf16>
    %194 = vector.shape_cast %193 : vector<1x64x32xbf16> to vector<64x32xbf16>
    %cst_80 = arith.constant dense<0.000000e+00> : vector<16x32xf32>
    %195 = tpu.matmul %192, %194, %cst_80 {dimension_numbers = #tpu.dot_dimension_numbers<[1], [0], [0], [1], [0, 0, 1, 1], [], []>} : vector<16x64xbf16>, vector<64x32xbf16>, vector<16x32xf32> -> vector<16x32xf32>
    %c0_81 = arith.constant 0 : index
    %c0_82 = arith.constant 0 : index
    %c0_83 = arith.constant 0 : index
    %196 = vector.load %arg16[%c0_81, %c0_82, %c0_83] : memref<2x1x32xf32, #tpu.memory_space<vmem>>, vector<1x1x32xf32>
    %197 = vector.shape_cast %196 : vector<1x1x32xf32> to vector<1x32xf32>
    %198 = vector.broadcast %197 : vector<1x32xf32> to vector<16x32xf32>
    %199 = arith.addf %195, %198 : vector<16x32xf32>
    %200 = arith.addf %199, %170 : vector<16x32xf32>
    %c0_84 = arith.constant 0 : index
    %c0_85 = arith.constant 0 : index
    %c0_86 = arith.constant 0 : index
    %201 = vector.load %arg17[%c0_84, %c0_85, %c0_86] : memref<2x1x32xf32, #tpu.memory_space<vmem>>, vector<1x1x32xf32>
    %202 = vector.shape_cast %201 : vector<1x1x32xf32> to vector<1x32xf32>
    %c0_87 = arith.constant 0 : index
    %c0_88 = arith.constant 0 : index
    %c0_89 = arith.constant 0 : index
    %203 = vector.load %arg18[%c0_87, %c0_88, %c0_89] : memref<2x1x32xf32, #tpu.memory_space<vmem>>, vector<1x1x32xf32>
    %204 = vector.shape_cast %203 : vector<1x1x32xf32> to vector<1x32xf32>
    %cst_90 = arith.constant dense<0.000000e+00> : vector<16xf32>
    %205 = vector.multi_reduction <add>, %200, %cst_90 [1] : vector<16x32xf32> to vector<16xf32>
    %206 = vector.shape_cast %205 : vector<16xf32> to vector<16x1xf32>
    %cst_91 = arith.constant 3.200000e+01 : f32
    %207 = vector.broadcast %cst_91 : f32 to vector<16x1xf32>
    %208 = arith.divf %206, %207 : vector<16x1xf32>
    %209 = vector.broadcast %208 : vector<16x1xf32> to vector<16x32xf32>
    %210 = arith.subf %200, %209 : vector<16x32xf32>
    %211 = arith.mulf %210, %210 : vector<16x32xf32>
    %cst_92 = arith.constant dense<0.000000e+00> : vector<16xf32>
    %212 = vector.multi_reduction <add>, %211, %cst_92 [1] : vector<16x32xf32> to vector<16xf32>
    %213 = vector.shape_cast %212 : vector<16xf32> to vector<16x1xf32>
    %cst_93 = arith.constant 3.200000e+01 : f32
    %214 = vector.broadcast %cst_93 : f32 to vector<16x1xf32>
    %215 = arith.divf %213, %214 : vector<16x1xf32>
    %216 = vector.broadcast %208 : vector<16x1xf32> to vector<16x32xf32>
    %217 = arith.subf %200, %216 : vector<16x32xf32>
    %cst_94 = arith.constant 9.99999996E-13 : f32
    %218 = vector.broadcast %cst_94 : f32 to vector<16x1xf32>
    %219 = arith.addf %215, %218 : vector<16x1xf32>
    %220 = math.rsqrt %219 : vector<16x1xf32>
    %221 = vector.broadcast %220 : vector<16x1xf32> to vector<16x32xf32>
    %222 = arith.mulf %217, %221 : vector<16x32xf32>
    %223 = vector.broadcast %202 : vector<1x32xf32> to vector<16x32xf32>
    %224 = arith.mulf %222, %223 : vector<16x32xf32>
    %225 = vector.broadcast %204 : vector<1x32xf32> to vector<16x32xf32>
    %226 = arith.addf %224, %225 : vector<16x32xf32>
    %227 = arith.truncf %226 : vector<16x32xf32> to vector<16x32xbf16>
    %c1 = arith.constant 1 : index
    %c0_95 = arith.constant 0 : index
    %c0_96 = arith.constant 0 : index
    %228 = vector.load %arg7[%c1, %c0_95, %c0_96] : memref<2x32x96xbf16, #tpu.memory_space<vmem>>, vector<1x32x96xbf16>
    %229 = vector.shape_cast %228 : vector<1x32x96xbf16> to vector<32x96xbf16>
    %cst_97 = arith.constant dense<0.000000e+00> : vector<16x96xf32>
    %230 = tpu.matmul %227, %229, %cst_97 {dimension_numbers = #tpu.dot_dimension_numbers<[1], [0], [0], [1], [0, 0, 1, 1], [], []>} : vector<16x32xbf16>, vector<32x96xbf16>, vector<16x96xf32> -> vector<16x96xf32>
    %c1_98 = arith.constant 1 : index
    %c0_99 = arith.constant 0 : index
    %c0_100 = arith.constant 0 : index
    %231 = vector.load %arg8[%c1_98, %c0_99, %c0_100] : memref<2x1x96xf32, #tpu.memory_space<vmem>>, vector<1x1x96xf32>
    %232 = vector.shape_cast %231 : vector<1x1x96xf32> to vector<1x96xf32>
    %233 = vector.broadcast %232 : vector<1x96xf32> to vector<16x96xf32>
    %234 = arith.addf %230, %233 : vector<16x96xf32>
    %235 = arith.truncf %234 : vector<16x96xf32> to vector<16x96xbf16>
    %236 = vector.shape_cast %235 : vector<16x96xbf16> to vector<2x8x96xbf16>
    %237 = vector.extract_strided_slice %236 {offsets = [0, 0, 0], sizes = [2, 8, 8], strides = [1, 1, 1]} : vector<2x8x96xbf16> to vector<2x8x8xbf16>
    %238 = vector.extract_strided_slice %236 {offsets = [0, 0, 32], sizes = [2, 8, 8], strides = [1, 1, 1]} : vector<2x8x96xbf16> to vector<2x8x8xbf16>
    %239 = vector.extract_strided_slice %236 {offsets = [0, 0, 64], sizes = [2, 8, 8], strides = [1, 1, 1]} : vector<2x8x96xbf16> to vector<2x8x8xbf16>
    "tpu.trace_start"() <{level = 10 : i32, message = "bqd,bkd->bqk"}> : () -> ()
    %cst_101 = arith.constant dense<0.000000e+00> : vector<2x8x8xf32>
    %240 = tpu.matmul %237, %238, %cst_101 {dimension_numbers = #tpu.dot_dimension_numbers<[2], [2], [1], [1], [0, 0, 0, 1, 1, 1], [0], [0]>} : vector<2x8x8xbf16>, vector<2x8x8xbf16>, vector<2x8x8xf32> -> vector<2x8x8xf32>
    "tpu.trace_stop"() : () -> ()
    %cst_102 = arith.constant 0.353553385 : f32
    %241 = vector.broadcast %cst_102 : f32 to vector<2x8x8xf32>
    %242 = arith.mulf %240, %241 : vector<2x8x8xf32>
    %243 = vector.broadcast %43 : vector<2x1x8xf32> to vector<2x8x8xf32>
    %244 = arith.addf %242, %243 : vector<2x8x8xf32>
    %cst_103 = arith.constant dense<0xFF800000> : vector<2x8xf32>
    %245 = vector.multi_reduction <maximumf>, %244, %cst_103 [2] : vector<2x8x8xf32> to vector<2x8xf32>
    %246 = vector.shape_cast %245 : vector<2x8xf32> to vector<2x8x1xf32>
    %247 = vector.broadcast %246 : vector<2x8x1xf32> to vector<2x8x8xf32>
    %248 = arith.subf %244, %247 : vector<2x8x8xf32>
    %249 = math.exp %248 : vector<2x8x8xf32>
    %cst_104 = arith.constant dense<0.000000e+00> : vector<2x8xf32>
    %250 = vector.multi_reduction <add>, %249, %cst_104 [2] : vector<2x8x8xf32> to vector<2x8xf32>
    %251 = vector.shape_cast %250 : vector<2x8xf32> to vector<2x8x1xf32>
    %252 = tpu.reciprocal %251 {approx = true} : vector<2x8x1xf32> -> vector<2x8x1xf32>
    %253 = vector.broadcast %252 : vector<2x8x1xf32> to vector<2x8x8xf32>
    %254 = arith.mulf %249, %253 : vector<2x8x8xf32>
    %255 = arith.truncf %254 : vector<2x8x8xf32> to vector<2x8x8xbf16>
    "tpu.trace_start"() <{level = 10 : i32, message = "bqk,bkd->bqd"}> : () -> ()
    %cst_105 = arith.constant dense<0.000000e+00> : vector<2x8x8xf32>
    %256 = tpu.matmul %255, %239, %cst_105 {dimension_numbers = #tpu.dot_dimension_numbers<[2], [1], [1], [2], [0, 0, 0, 1, 1, 2], [0], [0]>} : vector<2x8x8xbf16>, vector<2x8x8xbf16>, vector<2x8x8xf32> -> vector<2x8x8xf32>
    "tpu.trace_stop"() : () -> ()
    %257 = vector.extract_strided_slice %236 {offsets = [0, 0, 8], sizes = [2, 8, 8], strides = [1, 1, 1]} : vector<2x8x96xbf16> to vector<2x8x8xbf16>
    %258 = vector.extract_strided_slice %236 {offsets = [0, 0, 40], sizes = [2, 8, 8], strides = [1, 1, 1]} : vector<2x8x96xbf16> to vector<2x8x8xbf16>
    %259 = vector.extract_strided_slice %236 {offsets = [0, 0, 72], sizes = [2, 8, 8], strides = [1, 1, 1]} : vector<2x8x96xbf16> to vector<2x8x8xbf16>
    "tpu.trace_start"() <{level = 10 : i32, message = "bqd,bkd->bqk"}> : () -> ()
    %cst_106 = arith.constant dense<0.000000e+00> : vector<2x8x8xf32>
    %260 = tpu.matmul %257, %258, %cst_106 {dimension_numbers = #tpu.dot_dimension_numbers<[2], [2], [1], [1], [0, 0, 0, 1, 1, 1], [0], [0]>} : vector<2x8x8xbf16>, vector<2x8x8xbf16>, vector<2x8x8xf32> -> vector<2x8x8xf32>
    "tpu.trace_stop"() : () -> ()
    %cst_107 = arith.constant 0.353553385 : f32
    %261 = vector.broadcast %cst_107 : f32 to vector<2x8x8xf32>
    %262 = arith.mulf %260, %261 : vector<2x8x8xf32>
    %263 = vector.broadcast %43 : vector<2x1x8xf32> to vector<2x8x8xf32>
    %264 = arith.addf %262, %263 : vector<2x8x8xf32>
    %cst_108 = arith.constant dense<0xFF800000> : vector<2x8xf32>
    %265 = vector.multi_reduction <maximumf>, %264, %cst_108 [2] : vector<2x8x8xf32> to vector<2x8xf32>
    %266 = vector.shape_cast %265 : vector<2x8xf32> to vector<2x8x1xf32>
    %267 = vector.broadcast %266 : vector<2x8x1xf32> to vector<2x8x8xf32>
    %268 = arith.subf %264, %267 : vector<2x8x8xf32>
    %269 = math.exp %268 : vector<2x8x8xf32>
    %cst_109 = arith.constant dense<0.000000e+00> : vector<2x8xf32>
    %270 = vector.multi_reduction <add>, %269, %cst_109 [2] : vector<2x8x8xf32> to vector<2x8xf32>
    %271 = vector.shape_cast %270 : vector<2x8xf32> to vector<2x8x1xf32>
    %272 = tpu.reciprocal %271 {approx = true} : vector<2x8x1xf32> -> vector<2x8x1xf32>
    %273 = vector.broadcast %272 : vector<2x8x1xf32> to vector<2x8x8xf32>
    %274 = arith.mulf %269, %273 : vector<2x8x8xf32>
    %275 = arith.truncf %274 : vector<2x8x8xf32> to vector<2x8x8xbf16>
    "tpu.trace_start"() <{level = 10 : i32, message = "bqk,bkd->bqd"}> : () -> ()
    %cst_110 = arith.constant dense<0.000000e+00> : vector<2x8x8xf32>
    %276 = tpu.matmul %275, %259, %cst_110 {dimension_numbers = #tpu.dot_dimension_numbers<[2], [1], [1], [2], [0, 0, 0, 1, 1, 2], [0], [0]>} : vector<2x8x8xbf16>, vector<2x8x8xbf16>, vector<2x8x8xf32> -> vector<2x8x8xf32>
    "tpu.trace_stop"() : () -> ()
    %277 = vector.extract_strided_slice %236 {offsets = [0, 0, 16], sizes = [2, 8, 8], strides = [1, 1, 1]} : vector<2x8x96xbf16> to vector<2x8x8xbf16>
    %278 = vector.extract_strided_slice %236 {offsets = [0, 0, 48], sizes = [2, 8, 8], strides = [1, 1, 1]} : vector<2x8x96xbf16> to vector<2x8x8xbf16>
    %279 = vector.extract_strided_slice %236 {offsets = [0, 0, 80], sizes = [2, 8, 8], strides = [1, 1, 1]} : vector<2x8x96xbf16> to vector<2x8x8xbf16>
    "tpu.trace_start"() <{level = 10 : i32, message = "bqd,bkd->bqk"}> : () -> ()
    %cst_111 = arith.constant dense<0.000000e+00> : vector<2x8x8xf32>
    %280 = tpu.matmul %277, %278, %cst_111 {dimension_numbers = #tpu.dot_dimension_numbers<[2], [2], [1], [1], [0, 0, 0, 1, 1, 1], [0], [0]>} : vector<2x8x8xbf16>, vector<2x8x8xbf16>, vector<2x8x8xf32> -> vector<2x8x8xf32>
    "tpu.trace_stop"() : () -> ()
    %cst_112 = arith.constant 0.353553385 : f32
    %281 = vector.broadcast %cst_112 : f32 to vector<2x8x8xf32>
    %282 = arith.mulf %280, %281 : vector<2x8x8xf32>
    %283 = vector.broadcast %43 : vector<2x1x8xf32> to vector<2x8x8xf32>
    %284 = arith.addf %282, %283 : vector<2x8x8xf32>
    %cst_113 = arith.constant dense<0xFF800000> : vector<2x8xf32>
    %285 = vector.multi_reduction <maximumf>, %284, %cst_113 [2] : vector<2x8x8xf32> to vector<2x8xf32>
    %286 = vector.shape_cast %285 : vector<2x8xf32> to vector<2x8x1xf32>
    %287 = vector.broadcast %286 : vector<2x8x1xf32> to vector<2x8x8xf32>
    %288 = arith.subf %284, %287 : vector<2x8x8xf32>
    %289 = math.exp %288 : vector<2x8x8xf32>
    %cst_114 = arith.constant dense<0.000000e+00> : vector<2x8xf32>
    %290 = vector.multi_reduction <add>, %289, %cst_114 [2] : vector<2x8x8xf32> to vector<2x8xf32>
    %291 = vector.shape_cast %290 : vector<2x8xf32> to vector<2x8x1xf32>
    %292 = tpu.reciprocal %291 {approx = true} : vector<2x8x1xf32> -> vector<2x8x1xf32>
    %293 = vector.broadcast %292 : vector<2x8x1xf32> to vector<2x8x8xf32>
    %294 = arith.mulf %289, %293 : vector<2x8x8xf32>
    %295 = arith.truncf %294 : vector<2x8x8xf32> to vector<2x8x8xbf16>
    "tpu.trace_start"() <{level = 10 : i32, message = "bqk,bkd->bqd"}> : () -> ()
    %cst_115 = arith.constant dense<0.000000e+00> : vector<2x8x8xf32>
    %296 = tpu.matmul %295, %279, %cst_115 {dimension_numbers = #tpu.dot_dimension_numbers<[2], [1], [1], [2], [0, 0, 0, 1, 1, 2], [0], [0]>} : vector<2x8x8xbf16>, vector<2x8x8xbf16>, vector<2x8x8xf32> -> vector<2x8x8xf32>
    "tpu.trace_stop"() : () -> ()
    %297 = vector.extract_strided_slice %236 {offsets = [0, 0, 24], sizes = [2, 8, 8], strides = [1, 1, 1]} : vector<2x8x96xbf16> to vector<2x8x8xbf16>
    %298 = vector.extract_strided_slice %236 {offsets = [0, 0, 56], sizes = [2, 8, 8], strides = [1, 1, 1]} : vector<2x8x96xbf16> to vector<2x8x8xbf16>
    %299 = vector.extract_strided_slice %236 {offsets = [0, 0, 88], sizes = [2, 8, 8], strides = [1, 1, 1]} : vector<2x8x96xbf16> to vector<2x8x8xbf16>
    "tpu.trace_start"() <{level = 10 : i32, message = "bqd,bkd->bqk"}> : () -> ()
    %cst_116 = arith.constant dense<0.000000e+00> : vector<2x8x8xf32>
    %300 = tpu.matmul %297, %298, %cst_116 {dimension_numbers = #tpu.dot_dimension_numbers<[2], [2], [1], [1], [0, 0, 0, 1, 1, 1], [0], [0]>} : vector<2x8x8xbf16>, vector<2x8x8xbf16>, vector<2x8x8xf32> -> vector<2x8x8xf32>
    "tpu.trace_stop"() : () -> ()
    %cst_117 = arith.constant 0.353553385 : f32
    %301 = vector.broadcast %cst_117 : f32 to vector<2x8x8xf32>
    %302 = arith.mulf %300, %301 : vector<2x8x8xf32>
    %303 = vector.broadcast %43 : vector<2x1x8xf32> to vector<2x8x8xf32>
    %304 = arith.addf %302, %303 : vector<2x8x8xf32>
    %cst_118 = arith.constant dense<0xFF800000> : vector<2x8xf32>
    %305 = vector.multi_reduction <maximumf>, %304, %cst_118 [2] : vector<2x8x8xf32> to vector<2x8xf32>
    %306 = vector.shape_cast %305 : vector<2x8xf32> to vector<2x8x1xf32>
    %307 = vector.broadcast %306 : vector<2x8x1xf32> to vector<2x8x8xf32>
    %308 = arith.subf %304, %307 : vector<2x8x8xf32>
    %309 = math.exp %308 : vector<2x8x8xf32>
    %cst_119 = arith.constant dense<0.000000e+00> : vector<2x8xf32>
    %310 = vector.multi_reduction <add>, %309, %cst_119 [2] : vector<2x8x8xf32> to vector<2x8xf32>
    %311 = vector.shape_cast %310 : vector<2x8xf32> to vector<2x8x1xf32>
    %312 = tpu.reciprocal %311 {approx = true} : vector<2x8x1xf32> -> vector<2x8x1xf32>
    %313 = vector.broadcast %312 : vector<2x8x1xf32> to vector<2x8x8xf32>
    %314 = arith.mulf %309, %313 : vector<2x8x8xf32>
    %315 = arith.truncf %314 : vector<2x8x8xf32> to vector<2x8x8xbf16>
    "tpu.trace_start"() <{level = 10 : i32, message = "bqk,bkd->bqd"}> : () -> ()
    %cst_120 = arith.constant dense<0.000000e+00> : vector<2x8x8xf32>
    %316 = tpu.matmul %315, %299, %cst_120 {dimension_numbers = #tpu.dot_dimension_numbers<[2], [1], [1], [2], [0, 0, 0, 1, 1, 2], [0], [0]>} : vector<2x8x8xbf16>, vector<2x8x8xbf16>, vector<2x8x8xf32> -> vector<2x8x8xf32>
    "tpu.trace_stop"() : () -> ()
    %317 = tpu.concatenate %256, %276, %296, %316 in 2 : vector<2x8x8xf32>, vector<2x8x8xf32>, vector<2x8x8xf32>, vector<2x8x8xf32> -> vector<2x8x32xf32>
    %318 = vector.shape_cast %317 : vector<2x8x32xf32> to vector<16x32xf32>
    %319 = arith.truncf %318 : vector<16x32xf32> to vector<16x32xbf16>
    %c1_121 = arith.constant 1 : index
    %c0_122 = arith.constant 0 : index
    %c0_123 = arith.constant 0 : index
    %320 = vector.load %arg9[%c1_121, %c0_122, %c0_123] : memref<2x32x32xbf16, #tpu.memory_space<vmem>>, vector<1x32x32xbf16>
    %321 = vector.shape_cast %320 : vector<1x32x32xbf16> to vector<32x32xbf16>
    %cst_124 = arith.constant dense<0.000000e+00> : vector<16x32xf32>
    %322 = tpu.matmul %319, %321, %cst_124 {dimension_numbers = #tpu.dot_dimension_numbers<[1], [0], [0], [1], [0, 0, 1, 1], [], []>} : vector<16x32xbf16>, vector<32x32xbf16>, vector<16x32xf32> -> vector<16x32xf32>
    %c1_125 = arith.constant 1 : index
    %c0_126 = arith.constant 0 : index
    %c0_127 = arith.constant 0 : index
    %323 = vector.load %arg10[%c1_125, %c0_126, %c0_127] : memref<2x1x32xf32, #tpu.memory_space<vmem>>, vector<1x1x32xf32>
    %324 = vector.shape_cast %323 : vector<1x1x32xf32> to vector<1x32xf32>
    %325 = vector.broadcast %324 : vector<1x32xf32> to vector<16x32xf32>
    %326 = arith.addf %322, %325 : vector<16x32xf32>
    %327 = arith.addf %326, %226 : vector<16x32xf32>
    %c1_128 = arith.constant 1 : index
    %c0_129 = arith.constant 0 : index
    %c0_130 = arith.constant 0 : index
    %328 = vector.load %arg11[%c1_128, %c0_129, %c0_130] : memref<2x1x32xf32, #tpu.memory_space<vmem>>, vector<1x1x32xf32>
    %329 = vector.shape_cast %328 : vector<1x1x32xf32> to vector<1x32xf32>
    %c1_131 = arith.constant 1 : index
    %c0_132 = arith.constant 0 : index
    %c0_133 = arith.constant 0 : index
    %330 = vector.load %arg12[%c1_131, %c0_132, %c0_133] : memref<2x1x32xf32, #tpu.memory_space<vmem>>, vector<1x1x32xf32>
    %331 = vector.shape_cast %330 : vector<1x1x32xf32> to vector<1x32xf32>
    %cst_134 = arith.constant dense<0.000000e+00> : vector<16xf32>
    %332 = vector.multi_reduction <add>, %327, %cst_134 [1] : vector<16x32xf32> to vector<16xf32>
    %333 = vector.shape_cast %332 : vector<16xf32> to vector<16x1xf32>
    %cst_135 = arith.constant 3.200000e+01 : f32
    %334 = vector.broadcast %cst_135 : f32 to vector<16x1xf32>
    %335 = arith.divf %333, %334 : vector<16x1xf32>
    %336 = vector.broadcast %335 : vector<16x1xf32> to vector<16x32xf32>
    %337 = arith.subf %327, %336 : vector<16x32xf32>
    %338 = arith.mulf %337, %337 : vector<16x32xf32>
    %cst_136 = arith.constant dense<0.000000e+00> : vector<16xf32>
    %339 = vector.multi_reduction <add>, %338, %cst_136 [1] : vector<16x32xf32> to vector<16xf32>
    %340 = vector.shape_cast %339 : vector<16xf32> to vector<16x1xf32>
    %cst_137 = arith.constant 3.200000e+01 : f32
    %341 = vector.broadcast %cst_137 : f32 to vector<16x1xf32>
    %342 = arith.divf %340, %341 : vector<16x1xf32>
    %343 = vector.broadcast %335 : vector<16x1xf32> to vector<16x32xf32>
    %344 = arith.subf %327, %343 : vector<16x32xf32>
    %cst_138 = arith.constant 9.99999996E-13 : f32
    %345 = vector.broadcast %cst_138 : f32 to vector<16x1xf32>
    %346 = arith.addf %342, %345 : vector<16x1xf32>
    %347 = math.rsqrt %346 : vector<16x1xf32>
    %348 = vector.broadcast %347 : vector<16x1xf32> to vector<16x32xf32>
    %349 = arith.mulf %344, %348 : vector<16x32xf32>
    %350 = vector.broadcast %329 : vector<1x32xf32> to vector<16x32xf32>
    %351 = arith.mulf %349, %350 : vector<16x32xf32>
    %352 = vector.broadcast %331 : vector<1x32xf32> to vector<16x32xf32>
    %353 = arith.addf %351, %352 : vector<16x32xf32>
    %354 = arith.truncf %353 : vector<16x32xf32> to vector<16x32xbf16>
    %c1_139 = arith.constant 1 : index
    %c0_140 = arith.constant 0 : index
    %c0_141 = arith.constant 0 : index
    %355 = vector.load %arg13[%c1_139, %c0_140, %c0_141] : memref<2x32x64xbf16, #tpu.memory_space<vmem>>, vector<1x32x64xbf16>
    %356 = vector.shape_cast %355 : vector<1x32x64xbf16> to vector<32x64xbf16>
    %cst_142 = arith.constant dense<0.000000e+00> : vector<16x64xf32>
    %357 = tpu.matmul %354, %356, %cst_142 {dimension_numbers = #tpu.dot_dimension_numbers<[1], [0], [0], [1], [0, 0, 1, 1], [], []>} : vector<16x32xbf16>, vector<32x64xbf16>, vector<16x64xf32> -> vector<16x64xf32>
    %c1_143 = arith.constant 1 : index
    %c0_144 = arith.constant 0 : index
    %c0_145 = arith.constant 0 : index
    %358 = vector.load %arg14[%c1_143, %c0_144, %c0_145] : memref<2x1x64xf32, #tpu.memory_space<vmem>>, vector<1x1x64xf32>
    %359 = vector.shape_cast %358 : vector<1x1x64xf32> to vector<1x64xf32>
    %360 = vector.broadcast %359 : vector<1x64xf32> to vector<16x64xf32>
    %361 = arith.addf %357, %360 : vector<16x64xf32>
    %cst_146 = arith.constant 5.000000e-01 : f32
    %362 = vector.broadcast %cst_146 : f32 to vector<16x64xf32>
    %363 = arith.mulf %362, %361 : vector<16x64xf32>
    %cst_147 = arith.constant 4.471500e-02 : f32
    %364 = vector.broadcast %cst_147 : f32 to vector<16x64xf32>
    %365 = arith.mulf %364, %361 : vector<16x64xf32>
    %366 = arith.mulf %365, %361 : vector<16x64xf32>
    %367 = arith.mulf %366, %361 : vector<16x64xf32>
    %368 = arith.addf %361, %367 : vector<16x64xf32>
    %cst_148 = arith.constant 0.797884583 : f32
    %369 = vector.broadcast %cst_148 : f32 to vector<16x64xf32>
    %370 = arith.mulf %369, %368 : vector<16x64xf32>
    %371 = math.tanh %370 : vector<16x64xf32>
    %cst_149 = arith.constant 1.000000e+00 : f32
    %372 = vector.broadcast %cst_149 : f32 to vector<16x64xf32>
    %373 = arith.addf %372, %371 : vector<16x64xf32>
    %374 = arith.mulf %363, %373 : vector<16x64xf32>
    %375 = arith.truncf %374 : vector<16x64xf32> to vector<16x64xbf16>
    %c1_150 = arith.constant 1 : index
    %c0_151 = arith.constant 0 : index
    %c0_152 = arith.constant 0 : index
    %376 = vector.load %arg15[%c1_150, %c0_151, %c0_152] : memref<2x64x32xbf16, #tpu.memory_space<vmem>>, vector<1x64x32xbf16>
    %377 = vector.shape_cast %376 : vector<1x64x32xbf16> to vector<64x32xbf16>
    %cst_153 = arith.constant dense<0.000000e+00> : vector<16x32xf32>
    %378 = tpu.matmul %375, %377, %cst_153 {dimension_numbers = #tpu.dot_dimension_numbers<[1], [0], [0], [1], [0, 0, 1, 1], [], []>} : vector<16x64xbf16>, vector<64x32xbf16>, vector<16x32xf32> -> vector<16x32xf32>
    %c1_154 = arith.constant 1 : index
    %c0_155 = arith.constant 0 : index
    %c0_156 = arith.constant 0 : index
    %379 = vector.load %arg16[%c1_154, %c0_155, %c0_156] : memref<2x1x32xf32, #tpu.memory_space<vmem>>, vector<1x1x32xf32>
    %380 = vector.shape_cast %379 : vector<1x1x32xf32> to vector<1x32xf32>
    %381 = vector.broadcast %380 : vector<1x32xf32> to vector<16x32xf32>
    %382 = arith.addf %378, %381 : vector<16x32xf32>
    %383 = arith.addf %382, %353 : vector<16x32xf32>
    %c1_157 = arith.constant 1 : index
    %c0_158 = arith.constant 0 : index
    %c0_159 = arith.constant 0 : index
    %384 = vector.load %arg17[%c1_157, %c0_158, %c0_159] : memref<2x1x32xf32, #tpu.memory_space<vmem>>, vector<1x1x32xf32>
    %385 = vector.shape_cast %384 : vector<1x1x32xf32> to vector<1x32xf32>
    %c1_160 = arith.constant 1 : index
    %c0_161 = arith.constant 0 : index
    %c0_162 = arith.constant 0 : index
    %386 = vector.load %arg18[%c1_160, %c0_161, %c0_162] : memref<2x1x32xf32, #tpu.memory_space<vmem>>, vector<1x1x32xf32>
    %387 = vector.shape_cast %386 : vector<1x1x32xf32> to vector<1x32xf32>
    %cst_163 = arith.constant dense<0.000000e+00> : vector<16xf32>
    %388 = vector.multi_reduction <add>, %383, %cst_163 [1] : vector<16x32xf32> to vector<16xf32>
    %389 = vector.shape_cast %388 : vector<16xf32> to vector<16x1xf32>
    %cst_164 = arith.constant 3.200000e+01 : f32
    %390 = vector.broadcast %cst_164 : f32 to vector<16x1xf32>
    %391 = arith.divf %389, %390 : vector<16x1xf32>
    %392 = vector.broadcast %391 : vector<16x1xf32> to vector<16x32xf32>
    %393 = arith.subf %383, %392 : vector<16x32xf32>
    %394 = arith.mulf %393, %393 : vector<16x32xf32>
    %cst_165 = arith.constant dense<0.000000e+00> : vector<16xf32>
    %395 = vector.multi_reduction <add>, %394, %cst_165 [1] : vector<16x32xf32> to vector<16xf32>
    %396 = vector.shape_cast %395 : vector<16xf32> to vector<16x1xf32>
    %cst_166 = arith.constant 3.200000e+01 : f32
    %397 = vector.broadcast %cst_166 : f32 to vector<16x1xf32>
    %398 = arith.divf %396, %397 : vector<16x1xf32>
    %399 = vector.broadcast %391 : vector<16x1xf32> to vector<16x32xf32>
    %400 = arith.subf %383, %399 : vector<16x32xf32>
    %cst_167 = arith.constant 9.99999996E-13 : f32
    %401 = vector.broadcast %cst_167 : f32 to vector<16x1xf32>
    %402 = arith.addf %398, %401 : vector<16x1xf32>
    %403 = math.rsqrt %402 : vector<16x1xf32>
    %404 = vector.broadcast %403 : vector<16x1xf32> to vector<16x32xf32>
    %405 = arith.mulf %400, %404 : vector<16x32xf32>
    %406 = vector.broadcast %385 : vector<1x32xf32> to vector<16x32xf32>
    %407 = arith.mulf %405, %406 : vector<16x32xf32>
    %408 = vector.broadcast %387 : vector<1x32xf32> to vector<16x32xf32>
    %409 = arith.addf %407, %408 : vector<16x32xf32>
    %410 = vector.extract_strided_slice %409 {offsets = [0, 0], sizes = [1, 32], strides = [1, 1]} : vector<16x32xf32> to vector<1x32xf32>
    %411 = vector.extract_strided_slice %409 {offsets = [8, 0], sizes = [1, 32], strides = [1, 1]} : vector<16x32xf32> to vector<1x32xf32>
    %412 = tpu.concatenate %410, %411 in 0 : vector<1x32xf32>, vector<1x32xf32> -> vector<2x32xf32>
    %413 = arith.truncf %412 : vector<2x32xf32> to vector<2x32xbf16>
    %c0_168 = arith.constant 0 : index
    %c0_169 = arith.constant 0 : index
    %414 = vector.load %arg19[%c0_168, %c0_169] : memref<32x32xbf16, #tpu.memory_space<vmem>>, vector<32x32xbf16>
    %cst_170 = arith.constant dense<0.000000e+00> : vector<2x32xf32>
    %415 = tpu.matmul %413, %414, %cst_170 {dimension_numbers = #tpu.dot_dimension_numbers<[1], [0], [0], [1], [0, 0, 1, 1], [], []>} : vector<2x32xbf16>, vector<32x32xbf16>, vector<2x32xf32> -> vector<2x32xf32>
    %c0_171 = arith.constant 0 : index
    %c0_172 = arith.constant 0 : index
    %416 = vector.load %arg20[%c0_171, %c0_172] : memref<1x32xf32, #tpu.memory_space<vmem>>, vector<1x32xf32>
    %417 = vector.broadcast %416 : vector<1x32xf32> to vector<2x32xf32>
    %418 = arith.addf %415, %417 : vector<2x32xf32>
    %419 = math.tanh %418 : vector<2x32xf32>
    %420 = arith.truncf %419 : vector<2x32xf32> to vector<2x32xbf16>
    %c0_173 = arith.constant 0 : index
    %c0_174 = arith.constant 0 : index
    %421 = vector.load %arg21[%c0_173, %c0_174] : memref<32x1xbf16, #tpu.memory_space<vmem>>, vector<32x1xbf16>
    %cst_175 = arith.constant dense<0.000000e+00> : vector<2x1xf32>
    %422 = tpu.matmul %420, %421, %cst_175 {dimension_numbers = #tpu.dot_dimension_numbers<[1], [0], [0], [1], [0, 0, 1, 1], [], []>} : vector<2x32xbf16>, vector<32x1xbf16>, vector<2x1xf32> -> vector<2x1xf32>
    %c0_176 = arith.constant 0 : index
    %c0_177 = arith.constant 0 : index
    %423 = vector.load %arg22[%c0_176, %c0_177] : memref<1x1xf32, #tpu.memory_space<vmem>>, vector<1x1xf32>
    %424 = vector.broadcast %423 : vector<1x1xf32> to vector<2x1xf32>
    %425 = arith.addf %422, %424 : vector<2x1xf32>
    %426 = arith.negf %425 : vector<2x1xf32>
    %427 = math.exp %426 : vector<2x1xf32>
    %cst_178 = arith.constant 1.000000e+00 : f32
    %428 = vector.broadcast %cst_178 : f32 to vector<2x1xf32>
    %429 = arith.addf %428, %427 : vector<2x1xf32>
    %430 = arith.divf %428, %429 : vector<2x1xf32>
    %c0_179 = arith.constant 0 : index
    %c0_180 = arith.constant 0 : index
    %431 = vector.load %arg23[%c0_179, %c0_180] : memref<2x1xf32, #tpu.memory_space<vmem>>, vector<2x1xf32>
    tpu.vector_store %arg23[%c0_179, %c0_180], %430 {strides = array<i32>} : memref<2x1xf32, #tpu.memory_space<vmem>>, vector<2x1xf32>,
    return
  }
}

</mosaic_0001>

<llo_original>
// kernel: tpu_custom_call.1
$region0: #{tpu_custom_call.1}
  #allocation0 [shape = 'u32[]', space=smem, size = 0x4, offset = 0x4, fixed_abs, tag = 'smem constant byte address 0x4 - core index']
  #allocation1 [shape = 'u32[72,128]{1,0:T(1,128)}', space=vmem, size = 0x9000, scoped, tag = 'internal scratch']
  #allocation2 [shape = 'f32[1,1]{1,0:T(1,128)S(1)}', space=vmem, size = 0x200, scoped, tag = 'scoped memory for tpu_custom_call.1']
  %s0 = inlined_call_operand.vmem [shape: s32[16,1], index: 0, kind: input, shape index: {}]
  %s1 = inlined_call_operand.vmem [shape: s32[2,1,8], index: 1, kind: input, shape index: {}]
  %s2 = inlined_call_operand.vmem [shape: f32[128,32], index: 2, kind: input, shape index: {}]
  %s3 = inlined_call_operand.vmem [shape: f32[16,32], index: 3, kind: input, shape index: {}]
  %s4 = inlined_call_operand.vmem [shape: f32[2,32], index: 4, kind: input, shape index: {}]
  %s5 = inlined_call_operand.vmem [shape: f32[1,32], index: 5, kind: input, shape index: {}]
  %s6 = inlined_call_operand.vmem [shape: f32[1,32], index: 6, kind: input, shape index: {}]
  %s7 = inlined_call_operand.vmem [shape: bf16[2,32,96], index: 7, kind: input, shape index: {}]
  %s8 = inlined_call_operand.vmem [shape: f32[2,1,96], index: 8, kind: input, shape index: {}]
  %s9 = inlined_call_operand.vmem [shape: bf16[2,32,32], index: 9, kind: input, shape index: {}]
  %s10 = inlined_call_operand.vmem [shape: f32[2,1,32], index: 10, kind: input, shape index: {}]
  %s11 = inlined_call_operand.vmem [shape: f32[2,1,32], index: 11, kind: input, shape index: {}]
  %s12 = inlined_call_operand.vmem [shape: f32[2,1,32], index: 12, kind: input, shape index: {}]
  %s13 = inlined_call_operand.vmem [shape: bf16[2,32,64], index: 13, kind: input, shape index: {}]
  %s14 = inlined_call_operand.vmem [shape: f32[2,1,64], index: 14, kind: input, shape index: {}]
  %s15 = inlined_call_operand.vmem [shape: bf16[2,64,32], index: 15, kind: input, shape index: {}]
  %s16 = inlined_call_operand.vmem [shape: f32[2,1,32], index: 16, kind: input, shape index: {}]
  %s17 = inlined_call_operand.vmem [shape: f32[2,1,32], index: 17, kind: input, shape index: {}]
  %s18 = inlined_call_operand.vmem [shape: f32[2,1,32], index: 18, kind: input, shape index: {}]
  %s19 = inlined_call_operand.vmem [shape: bf16[32,32], index: 19, kind: input, shape index: {}]
  %s20 = inlined_call_operand.vmem [shape: f32[1,32], index: 20, kind: input, shape index: {}]
  %s21 = inlined_call_operand.vmem [shape: bf16[32,1], index: 21, kind: input, shape index: {}]
  %s22 = inlined_call_operand.<no memory space> [shape: f32[1,1], index: 22, kind: input, shape index: {}]
  %s23 = inlined_call_operand.vmem [shape: f32[2,1], index: 23, kind: output, shape index: {}]
  %s24 = sld [smem:[#allocation0]]
  $region102: #{tpu_custom_call.1} parent=0
    _
  %s26 = ssub.s32 1, %s24
  %s27 = scalar_select 0, %s26, %s24
  %v28 = vstv %s22
  %29 = vst [vmem:[#allocation2] sm:$0x1] %v28
  // Predicated region
  $region2: #{tpu_custom_call.1} parent=0 // pred_check
    _
  $region3: #{tpu_custom_call.1} parent=0 // pred_check_branch
    %31 = sbr.rel (0) target = $region5
  $region4: #{tpu_custom_call.1} parent=0 // pred_region
    _
  $region5: #{tpu_custom_call.1} parent=0 // pred_fallthru
    _
  // Predicated region
  $region6: #{tpu_custom_call.1} parent=0 // pred_check
    _
  $region7: #{tpu_custom_call.1} parent=0 // pred_check_branch
    %33 = sbr.rel (0) target = $region9
  $region8: #{tpu_custom_call.1} parent=0 // pred_region
    _
  $region9: #{tpu_custom_call.1} parent=0 // pred_fallthru
    _
  // Predicated region
  $region10: #{tpu_custom_call.1} parent=0 // pred_check
    _
  $region11: #{tpu_custom_call.1} parent=0 // pred_check_branch
    %35 = sbr.rel (0) target = $region13
  $region12: #{tpu_custom_call.1} parent=0 // pred_region
    _
  $region13: #{tpu_custom_call.1} parent=0 // pred_fallthru
    _
  // Predicated region
  $region14: #{tpu_custom_call.1} parent=0 // pred_check
    _
  $region15: #{tpu_custom_call.1} parent=0 // pred_check_branch
    %37 = sbr.rel (0) target = $region17
  $region16: #{tpu_custom_call.1} parent=0 // pred_region
    _
  $region17: #{tpu_custom_call.1} parent=0 // pred_fallthru
    _
  // Predicated region
  $region18: #{tpu_custom_call.1} parent=0 // pred_check
    _
  $region19: #{tpu_custom_call.1} parent=0 // pred_check_branch
    %39 = sbr.rel (0) target = $region21
  $region20: #{tpu_custom_call.1} parent=0 // pred_region
    _
  $region21: #{tpu_custom_call.1} parent=0 // pred_fallthru
    _
  // Predicated region
  $region22: #{tpu_custom_call.1} parent=0 // pred_check
    _
  $region23: #{tpu_custom_call.1} parent=0 // pred_check_branch
    %41 = sbr.rel (0) target = $region25
  $region24: #{tpu_custom_call.1} parent=0 // pred_region
    _
  $region25: #{tpu_custom_call.1} parent=0 // pred_fallthru
    _
  // Predicated region
  $region26: #{tpu_custom_call.1} parent=0 // pred_check
    _
  $region27: #{tpu_custom_call.1} parent=0 // pred_check_branch
    %43 = sbr.rel (0) target = $region29
  $region28: #{tpu_custom_call.1} parent=0 // pred_region
    _
  $region29: #{tpu_custom_call.1} parent=0 // pred_fallthru
    _
  // Predicated region
  $region30: #{tpu_custom_call.1} parent=0 // pred_check
    _
  $region31: #{tpu_custom_call.1} parent=0 // pred_check_branch
    %45 = sbr.rel (0) target = $region33
  $region32: #{tpu_custom_call.1} parent=0 // pred_region
    _
  $region33: #{tpu_custom_call.1} parent=0 // pred_fallthru
    _
  // Predicated region
  $region34: #{tpu_custom_call.1} parent=0 // pred_check
    _
  $region35: #{tpu_custom_call.1} parent=0 // pred_check_branch
    %47 = sbr.rel (0) target = $region37
  $region36: #{tpu_custom_call.1} parent=0 // pred_region
    _
  $region37: #{tpu_custom_call.1} parent=0 // pred_fallthru
    _
  // Predicated region
  $region38: #{tpu_custom_call.1} parent=0 // pred_check
    _
  $region39: #{tpu_custom_call.1} parent=0 // pred_check_branch
    %49 = sbr.rel (0) target = $region41
  $region40: #{tpu_custom_call.1} parent=0 // pred_region
    _
  $region41: #{tpu_custom_call.1} parent=0 // pred_fallthru
    _
  // Predicated region
  $region42: #{tpu_custom_call.1} parent=0 // pred_check
    _
  $region43: #{tpu_custom_call.1} parent=0 // pred_check_branch
    %51 = sbr.rel (0) target = $region45
  $region44: #{tpu_custom_call.1} parent=0 // pred_region
    _
  $region45: #{tpu_custom_call.1} parent=0 // pred_fallthru
    _
  // Predicated region
  $region46: #{tpu_custom_call.1} parent=0 // pred_check
    _
  $region47: #{tpu_custom_call.1} parent=0 // pred_check_branch
    %53 = sbr.rel (0) target = $region49
  $region48: #{tpu_custom_call.1} parent=0 // pred_region
    _
  $region49: #{tpu_custom_call.1} parent=0 // pred_fallthru
    _
  // Predicated region
  $region50: #{tpu_custom_call.1} parent=0 // pred_check
    _
  $region51: #{tpu_custom_call.1} parent=0 // pred_check_branch
    %55 = sbr.rel (0) target = $region53
  $region52: #{tpu_custom_call.1} parent=0 // pred_region
    _
  $region53: #{tpu_custom_call.1} parent=0 // pred_fallthru
    _
  // Predicated region
  $region54: #{tpu_custom_call.1} parent=0 // pred_check
    _
  $region55: #{tpu_custom_call.1} parent=0 // pred_check_branch
    %57 = sbr.rel (0) target = $region57
  $region56: #{tpu_custom_call.1} parent=0 // pred_region
    _
  $region57: #{tpu_custom_call.1} parent=0 // pred_fallthru
    _
  // Predicated region
  $region58: #{tpu_custom_call.1} parent=0 // pred_check
    _
  $region59: #{tpu_custom_call.1} parent=0 // pred_check_branch
    %59 = sbr.rel (0) target = $region61
  $region60: #{tpu_custom_call.1} parent=0 // pred_region
    _
  $region61: #{tpu_custom_call.1} parent=0 // pred_fallthru
    _
  // Predicated region
  $region62: #{tpu_custom_call.1} parent=0 // pred_check
    _
  $region63: #{tpu_custom_call.1} parent=0 // pred_check_branch
    %61 = sbr.rel (0) target = $region65
  $region64: #{tpu_custom_call.1} parent=0 // pred_region
    _
  $region65: #{tpu_custom_call.1} parent=0 // pred_fallthru
    _
  // Predicated region
  $region66: #{tpu_custom_call.1} parent=0 // pred_check
    _
  $region67: #{tpu_custom_call.1} parent=0 // pred_check_branch
    %63 = sbr.rel (0) target = $region69
  $region68: #{tpu_custom_call.1} parent=0 // pred_region
    _
  $region69: #{tpu_custom_call.1} parent=0 // pred_fallthru
    _
  // Predicated region
  $region70: #{tpu_custom_call.1} parent=0 // pred_check
    _
  $region71: #{tpu_custom_call.1} parent=0 // pred_check_branch
    %65 = sbr.rel (0) target = $region73
  $region72: #{tpu_custom_call.1} parent=0 // pred_region
    _
  $region73: #{tpu_custom_call.1} parent=0 // pred_fallthru
    _
  // Predicated region
  $region74: #{tpu_custom_call.1} parent=0 // pred_check
    _
  $region75: #{tpu_custom_call.1} parent=0 // pred_check_branch
    %67 = sbr.rel (0) target = $region77
  $region76: #{tpu_custom_call.1} parent=0 // pred_region
    _
  $region77: #{tpu_custom_call.1} parent=0 // pred_fallthru
    _
  // Predicated region
  $region78: #{tpu_custom_call.1} parent=0 // pred_check
    _
  $region79: #{tpu_custom_call.1} parent=0 // pred_check_branch
    %69 = sbr.rel (0) target = $region81
  $region80: #{tpu_custom_call.1} parent=0 // pred_region
    _
  $region81: #{tpu_custom_call.1} parent=0 // pred_fallthru
    _
  // Predicated region
  $region82: #{tpu_custom_call.1} parent=0 // pred_check
    _
  $region83: #{tpu_custom_call.1} parent=0 // pred_check_branch
    %71 = sbr.rel (0) target = $region85
  $region84: #{tpu_custom_call.1} parent=0 // pred_region
    _
  $region85: #{tpu_custom_call.1} parent=0 // pred_fallthru
    _
  // Predicated region
  $region86: #{tpu_custom_call.1} parent=0 // pred_check
    _
  $region87: #{tpu_custom_call.1} parent=0 // pred_check_branch
    %73 = sbr.rel (0) target = $region89
  $region88: #{tpu_custom_call.1} parent=0 // pred_region
    _
  $region89: #{tpu_custom_call.1} parent=0 // pred_fallthru
    _
  // Predicated region
  $region90: #{tpu_custom_call.1} parent=0 // pred_check
    _
  $region91: #{tpu_custom_call.1} parent=0 // pred_check_branch
    %75 = sbr.rel (0) target = $region93
  $region92: #{tpu_custom_call.1} parent=0 // pred_region
    _
  $region93: #{tpu_custom_call.1} parent=0 // pred_fallthru
    _
  %v77 = vlaneseq
  %v78 = vand.u32 %v77, 127
  %v79 = vld [vmem:[%s0] sm:$0xff]
  %v80 = vld [vmem:[%s0 + $0x8] sm:$0xff]
  %81 = vset.pattern.permute.xlu0 0
  %82 = vperm.xlu0 %81, %v79
  %v83 = vpop.permute.xlu0 %82
  %84 = vset.pattern.permute.xlu0 0
  %85 = vperm.xlu0 %84, %v80
  %v86 = vpop.permute.xlu0 %85
  %vm87 = vcmp.eq.s32.totalorder %v78, %v83
  %vm88 = vcmp.eq.s32.totalorder %v78, %v86
  %v89 = vsel %vm87, 1, 0
  %v90 = vsel %vm88, 1, 0
  %v91 = vcvt.s32.f32 %v89
  %v92 = vcvt.s32.f32 %v90
  %v93 = vld [vmem:[%s2] sm:$0xff]
  %v94 = vld [vmem:[%s2 + $0x8] sm:$0xff]
  %v95 = vld [vmem:[%s2 + $0x10] sm:$0xff]
  %v96 = vld [vmem:[%s2 + $0x18] sm:$0xff]
  %v97 = vld [vmem:[%s2 + $0x20] sm:$0xff]
  %v98 = vld [vmem:[%s2 + $0x28] sm:$0xff]
  %v99 = vld [vmem:[%s2 + $0x30] sm:$0xff]
  %v100 = vld [vmem:[%s2 + $0x38] sm:$0xff]
  %v101 = vld [vmem:[%s2 + $0x40] sm:$0xff]
  %v102 = vld [vmem:[%s2 + $0x48] sm:$0xff]
  %v103 = vld [vmem:[%s2 + $0x50] sm:$0xff]
  %v104 = vld [vmem:[%s2 + $0x58] sm:$0xff]
  %v105 = vld [vmem:[%s2 + $0x60] sm:$0xff]
  %v106 = vld [vmem:[%s2 + $0x68] sm:$0xff]
  %v107 = vld [vmem:[%s2 + $0x70] sm:$0xff]
  %v108 = vld [vmem:[%s2 + $0x78] sm:$0xff]
  %v109 = vld [vmem:[%s3] sm:$0xff]
  %110 = vmatpush.msra.mxu0 %v108
  %111 = vmatpush.msra.mxu0 %v107
  %112 = vmatpush.msra.mxu0 %v106
  %113 = vmatpush.msra.mxu0 %v105
  %114 = vmatpush.msra.mxu0 %v104
  %115 = vmatpush.msra.mxu0 %v103
  %116 = vmatpush.msra.mxu0 %v102
  %117 = vmatpush.msra.mxu0 %v101
  %118 = vmatpush.msra.mxu0 %v100
  %119 = vmatpush.msra.mxu0 %v99
  %120 = vmatpush.msra.mxu0 %v98
  %121 = vmatpush.msra.mxu0 %v97
  %122 = vmatpush.msra.mxu0 %v96
  %123 = vmatpush.msra.mxu0 %v95
  %124 = vmatpush.msra.mxu0 %v94
  %125 = vmatpush.msra.mxu0 %v93
  %126 = vmatmul.f32.gmra.mxu0 %v91
  %v127 = vpop.f32.mrf.mxu0
  %v128 = vadd.f32 %v109, %v127
  %129 = vmatmul.f32.gmra.mxu0 %v92
  %v130 = vpop.f32.mrf.mxu0
  %v131 = vadd.f32 %v109, %v130
  %132 = vdwg.mxu0
  %v133 = vld [vmem:[%s4] sm:$0x1]
  %v134 = vperm.slane %v133, 0
  %v135 = vadd.f32 %v128, %v134
  %v136 = vadd.f32 %v131, %v134
  %v137 = vld [vmem:[%s5] sm:$0x1]
  %v138 = vld [vmem:[%s6] sm:$0x1]
  %vm139 = vcmask 261120
  %v140 = vsel %vm139, %v135, 0.0
  %141 = vadd.xlane.f32.xlu0 %v140
  %v142 = vpop.xlane.xlu0 %141
  %v143 = vsel %vm139, %v136, 0.0
  %144 = vadd.xlane.f32.xlu0 %v143
  %v145 = vpop.xlane.xlu0 %144
  %v146 = vrcp.pop 32.0
  %v147 = vmul.f32 32.0, %v146
  %v148 = vsub.f32 1.0, %v147
  %v149 = vmul.f32 %v146, %v148
  %v150 = vadd.f32 %v146, %v149
  %vm151 = vweird.f32 %v146
  %v152 = vsel %vm151, %v146, %v150
  %v153 = vmul.f32 %v142, %v152
  %v154 = vmul.f32 %v145, %v152
  %v155 = vsub.f32 %v135, %v153
  %v156 = vsub.f32 %v136, %v154
  %v157 = vmul.f32 %v155, %v155
  %v158 = vmul.f32 %v156, %v156
  %v159 = vsel %vm139, %v157, 0.0
  %160 = vadd.xlane.f32.xlu0 %v159
  %v161 = vpop.xlane.xlu0 %160
  %v162 = vsel %vm139, %v158, 0.0
  %163 = vadd.xlane.f32.xlu0 %v162
  %v164 = vpop.xlane.xlu0 %163
  %v165 = vmul.f32 %v161, %v152
  %v166 = vmul.f32 %v164, %v152
  %v167 = vadd.f32 %v165, 1e-12
  %v168 = vadd.f32 %v166, 1e-12
  %v169 = vrsqrt.pop %v167
  %v170 = vmul.f32 %v169, %v167
  %v171 = vmul.f32 %v170, %v169
  %v172 = vmul.f32 0.5, %v171
  %v173 = vsub.f32 1.5, %v172
  %v174 = vmul.f32 %v169, %v173
  %vm175 = vweird.f32 %v167
  %vm176 = vweird.f32 %v169
  %vm177 = vmor %vm175, %vm176
  %v178 = vsel %vm177, %v169, %v174
  %v179 = vrsqrt.pop %v168
  %v180 = vmul.f32 %v179, %v168
  %v181 = vmul.f32 %v180, %v179
  %v182 = vmul.f32 0.5, %v181
  %v183 = vsub.f32 1.5, %v182
  %v184 = vmul.f32 %v179, %v183
  %vm185 = vweird.f32 %v168
  %vm186 = vweird.f32 %v179
  %vm187 = vmor %vm185, %vm186
  %v188 = vsel %vm187, %v179, %v184
  %v189 = vmul.f32 %v155, %v178
  %v190 = vmul.f32 %v156, %v188
  %v192 = vperm.slane %v137, 0
  %v194 = vmul.f32 %v189, %v192
  %v195 = vmul.f32 %v190, %v192
  %v197 = vperm.slane %v138, 0
  %v199 = vadd.f32 %v194, %v197
  %v200 = vadd.f32 %v195, %v197
  %v201 = vld [vmem:[%s1] sm:$0x1]
  %v202 = vld [vmem:[%s1 + $0x1] sm:$0x1]
  %v203 = vcvt.s32.f32 %v201
  %v204 = vcvt.s32.f32 %v202
  %v205 = vsub.f32 1.0, %v203
  %v206 = vsub.f32 1.0, %v204
  %v207 = vmul.f32 %v205, -1e+09
  %v208 = vmul.f32 %v206, -1e+09
  %v209 = vpack.c.bf16 %v200, %v199
  %v210 = vld [vmem:[%s7] sm:$0xf]
  %v211 = vld [vmem:[%s7 + $0x4] sm:$0xf]
  %v212 = vld [vmem:[%s7 + $0x8] sm:$0xf]
  %v213 = vld [vmem:[%s7 + $0xc] sm:$0xf]
  %v214 = vld [vmem:[%s8] sm:$0x1]
  %v216 = vperm.slane %v214, 0
  %v222 = vunpack.c.l.b16 %v210
  %v223 = vunpack.c.l.b16 %v211
  %v224 = vunpack.c.l.b16 %v212
  %v225 = vunpack.c.l.b16 %v213
  %v226 = vpack.c.b16 %v223, %v222
  %v227 = vpack.c.b16 %v225, %v224
  %v231 = vsel %vm139, %v209, 0
  %233 = vmatpush.bf16.msra.mxu0 0
  %234 = vmatpush.bf16.msra.mxu0 0
  %235 = vmatpush.bf16.msra.mxu0 0
  %236 = vmatpush.bf16.msra.mxu0 0
  %237 = vmatpush.bf16.msra.mxu0 0
  %238 = vmatpush.bf16.msra.mxu0 0
  %239 = vmatpush.bf16.msra.mxu0 %v227
  %240 = vmatpush.bf16.msra.mxu0 %v226
  %241 = vmatmul.bf16.gmra.mxu0 %v231
  %v242 = vpop.f32.mrf.mxu0
  %v243 = vadd.f32 %v216, %v242
  %v244 = vpop.f32.mrf.mxu0
  %v245 = vadd.f32 %v216, %v244
  %246 = vdwg.mxu0
  %v247 = vpack.c.bf16 %v243, %v243
  %v248 = vpack.c.bf16 %v245, %v245
  %v250 = vunpack.c.l.b16 %v247
  %v251 = vpack.c.b16 %v250, %v250
  %252 = vrot.lane.b32.xlu0 %v251, 96
  %v253 = vpop.permute.xlu0 %252
  %vm254 = vcmask 64512
  %v256 = vsel %vm254, %v247, 0
  %v259 = vsel %vm254, %v253, 0
  %261 = vmatpush.bf16.xpose.msra.mxu0 0
  %262 = vmatpush.bf16.xpose.msra.mxu0 0
  %263 = vmatpush.bf16.xpose.msra.mxu0 0
  %264 = vmatpush.bf16.xpose.msra.mxu0 0
  %265 = vmatpush.bf16.xpose.msra.mxu0 0
  %266 = vmatpush.bf16.xpose.msra.mxu0 0
  %267 = vmatpush.bf16.xpose.msra.mxu0 0
  %268 = vmatpush.bf16.xpose.msra.mxu0 %v259
  %269 = vmatmul.bf16.gmra.mxu0 %v256
  %v270 = vpop.f32.mrf.mxu0
  %v271 = vadd.f32 0.0, %v270
  %v272 = vpop.f32.mrf.mxu0
  %273 = vdwg.mxu0
  %v275 = vunpack.c.l.b16 %v248
  %v276 = vpack.c.b16 %v275, %v275
  %277 = vrot.lane.b32.xlu0 %v276, 96
  %v278 = vpop.permute.xlu0 %277
  %v280 = vsel %vm254, %v248, 0
  %v283 = vsel %vm254, %v278, 0
  %285 = vmatpush.bf16.xpose.msra.mxu0 0
  %286 = vmatpush.bf16.xpose.msra.mxu0 0
  %287 = vmatpush.bf16.xpose.msra.mxu0 0
  %288 = vmatpush.bf16.xpose.msra.mxu0 0
  %289 = vmatpush.bf16.xpose.msra.mxu0 0
  %290 = vmatpush.bf16.xpose.msra.mxu0 0
  %291 = vmatpush.bf16.xpose.msra.mxu0 0
  %292 = vmatpush.bf16.xpose.msra.mxu0 %v283
  %293 = vmatmul.bf16.gmra.mxu0 %v280
  %v294 = vpop.f32.mrf.mxu0
  %v295 = vadd.f32 0.0, %v294
  %v296 = vpop.f32.mrf.mxu0
  %297 = vdwg.mxu0
  %v298 = vmul.f32 %v271, 0.35355338
  %v299 = vmul.f32 %v295, 0.35355338
  %v302 = vperm.slane %v207, 0
  %v303 = vperm.slane %v208, 0
  %v306 = vadd.f32 %v298, %v302
  %v307 = vadd.f32 %v299, %v303
  %v308 = vsel %vm254, %v306, -inf
  %309 = vmax.xlane.f32.xlu0 %v308
  %v310 = vpop.xlane.xlu0 %309
  %v311 = vsel %vm254, %v307, -inf
  %312 = vmax.xlane.f32.xlu0 %v311
  %v313 = vpop.xlane.xlu0 %312
  %v314 = vsub.f32 %v306, %v310
  %v315 = vsub.f32 %v307, %v313
  %v316 = vmul.f32 %v314, 1.442695
  %v317 = vpow.pop %v316
  %v318 = vmul.f32 %v315, 1.442695
  %v319 = vpow.pop %v318
  %v320 = vsel %vm254, %v317, 0.0
  %321 = vadd.xlane.f32.xlu0 %v320
  %v322 = vpop.xlane.xlu0 %321
  %v323 = vsel %vm254, %v319, 0.0
  %324 = vadd.xlane.f32.xlu0 %v323
  %v325 = vpop.xlane.xlu0 %324
  %v326 = vrcp.pop %v322
  %v327 = vrcp.pop %v325
  %v328 = vmul.f32 %v317, %v326
  %v329 = vmul.f32 %v319, %v327
  %v330 = vpack.c.bf16 %v328, %v328
  %v331 = vpack.c.bf16 %v329, %v329
  %332 = vrot.lane.b32.xlu0 %v251, 64
  %v333 = vpop.permute.xlu0 %332
  %v335 = vsel %vm254, %v330, 0
  %vm337 = vcmask 1043456
  %v339 = vsel %vm337, %v333, 0
  %341 = vmatpush.bf16.msra.mxu0 0
  %342 = vmatpush.bf16.msra.mxu0 0
  %343 = vmatpush.bf16.msra.mxu0 0
  %344 = vmatpush.bf16.msra.mxu0 0
  %345 = vmatpush.bf16.msra.mxu0 0
  %346 = vmatpush.bf16.msra.mxu0 0
  %347 = vmatpush.bf16.msra.mxu0 0
  %348 = vmatpush.bf16.msra.mxu0 %v339
  %349 = vmatmul.bf16.gmra.mxu0 %v335
  %v350 = vpop.f32.mrf.mxu0
  %v351 = vadd.f32 0.0, %v350
  %v352 = vpop.f32.mrf.mxu0
  %353 = vdwg.mxu0
  %354 = vrot.lane.b32.xlu0 %v276, 64
  %v355 = vpop.permute.xlu0 %354
  %v357 = vsel %vm254, %v331, 0
  %v360 = vsel %vm337, %v355, 0
  %362 = vmatpush.bf16.msra.mxu0 0
  %363 = vmatpush.bf16.msra.mxu0 0
  %364 = vmatpush.bf16.msra.mxu0 0
  %365 = vmatpush.bf16.msra.mxu0 0
  %366 = vmatpush.bf16.msra.mxu0 0
  %367 = vmatpush.bf16.msra.mxu0 0
  %368 = vmatpush.bf16.msra.mxu0 0
  %369 = vmatpush.bf16.msra.mxu0 %v360
  %370 = vmatmul.bf16.gmra.mxu0 %v357
  %v371 = vpop.f32.mrf.mxu0
  %v372 = vadd.f32 0.0, %v371
  %v373 = vpop.f32.mrf.mxu0
  %374 = vdwg.mxu0
  %375 = vrot.lane.b32.xlu0 %v251, 120
  %v376 = vpop.permute.xlu0 %375
  %377 = vrot.lane.b32.xlu0 %v251, 88
  %v378 = vpop.permute.xlu0 %377
  %v380 = vsel %vm254, %v376, 0
  %v383 = vsel %vm254, %v378, 0
  %385 = vmatpush.bf16.xpose.msra.mxu0 0
  %386 = vmatpush.bf16.xpose.msra.mxu0 0
  %387 = vmatpush.bf16.xpose.msra.mxu0 0
  %388 = vmatpush.bf16.xpose.msra.mxu0 0
  %389 = vmatpush.bf16.xpose.msra.mxu0 0
  %390 = vmatpush.bf16.xpose.msra.mxu0 0
  %391 = vmatpush.bf16.xpose.msra.mxu0 0
  %392 = vmatpush.bf16.xpose.msra.mxu0 %v383
  %393 = vmatmul.bf16.gmra.mxu0 %v380
  %v394 = vpop.f32.mrf.mxu0
  %v395 = vadd.f32 0.0, %v394
  %v396 = vpop.f32.mrf.mxu0
  %397 = vdwg.mxu0
  %398 = vrot.lane.b32.xlu0 %v276, 120
  %v399 = vpop.permute.xlu0 %398
  %400 = vrot.lane.b32.xlu0 %v276, 88
  %v401 = vpop.permute.xlu0 %400
  %v403 = vsel %vm254, %v399, 0
  %v406 = vsel %vm254, %v401, 0
  %408 = vmatpush.bf16.xpose.msra.mxu0 0
  %409 = vmatpush.bf16.xpose.msra.mxu0 0
  %410 = vmatpush.bf16.xpose.msra.mxu0 0
  %411 = vmatpush.bf16.xpose.msra.mxu0 0
  %412 = vmatpush.bf16.xpose.msra.mxu0 0
  %413 = vmatpush.bf16.xpose.msra.mxu0 0
  %414 = vmatpush.bf16.xpose.msra.mxu0 0
  %415 = vmatpush.bf16.xpose.msra.mxu0 %v406
  %416 = vmatmul.bf16.gmra.mxu0 %v403
  %v417 = vpop.f32.mrf.mxu0
  %v418 = vadd.f32 0.0, %v417
  %v419 = vpop.f32.mrf.mxu0
  %420 = vdwg.mxu0
  %v421 = vmul.f32 %v395, 0.35355338
  %v422 = vmul.f32 %v418, 0.35355338
  %v423 = vadd.f32 %v421, %v302
  %v424 = vadd.f32 %v422, %v303
  %v425 = vsel %vm254, %v423, -inf
  %426 = vmax.xlane.f32.xlu0 %v425
  %v427 = vpop.xlane.xlu0 %426
  %v428 = vsel %vm254, %v424, -inf
  %429 = vmax.xlane.f32.xlu0 %v428
  %v430 = vpop.xlane.xlu0 %429
  %v431 = vsub.f32 %v423, %v427
  %v432 = vsub.f32 %v424, %v430
  %v433 = vmul.f32 %v431, 1.442695
  %v434 = vpow.pop %v433
  %v435 = vmul.f32 %v432, 1.442695
  %v436 = vpow.pop %v435
  %v437 = vsel %vm254, %v434, 0.0
  %438 = vadd.xlane.f32.xlu0 %v437
  %v439 = vpop.xlane.xlu0 %438
  %v440 = vsel %vm254, %v436, 0.0
  %441 = vadd.xlane.f32.xlu0 %v440
  %v442 = vpop.xlane.xlu0 %441
  %v443 = vrcp.pop %v439
  %v444 = vrcp.pop %v442
  %v445 = vmul.f32 %v434, %v443
  %v446 = vmul.f32 %v436, %v444
  %v447 = vpack.c.bf16 %v445, %v445
  %v448 = vpack.c.bf16 %v446, %v446
  %449 = vrot.lane.b32.xlu0 %v251, 56
  %v450 = vpop.permute.xlu0 %449
  %v452 = vsel %vm254, %v447, 0
  %v455 = vsel %vm337, %v450, 0
  %457 = vmatpush.bf16.msra.mxu0 0
  %458 = vmatpush.bf16.msra.mxu0 0
  %459 = vmatpush.bf16.msra.mxu0 0
  %460 = vmatpush.bf16.msra.mxu0 0
  %461 = vmatpush.bf16.msra.mxu0 0
  %462 = vmatpush.bf16.msra.mxu0 0
  %463 = vmatpush.bf16.msra.mxu0 0
  %464 = vmatpush.bf16.msra.mxu0 %v455
  %465 = vmatmul.bf16.gmra.mxu0 %v452
  %v466 = vpop.f32.mrf.mxu0
  %v467 = vadd.f32 0.0, %v466
  %v468 = vpop.f32.mrf.mxu0
  %469 = vdwg.mxu0
  %470 = vrot.lane.b32.xlu0 %v276, 56
  %v471 = vpop.permute.xlu0 %470
  %v473 = vsel %vm254, %v448, 0
  %v476 = vsel %vm337, %v471, 0
  %478 = vmatpush.bf16.msra.mxu0 0
  %479 = vmatpush.bf16.msra.mxu0 0
  %480 = vmatpush.bf16.msra.mxu0 0
  %481 = vmatpush.bf16.msra.mxu0 0
  %482 = vmatpush.bf16.msra.mxu0 0
  %483 = vmatpush.bf16.msra.mxu0 0
  %484 = vmatpush.bf16.msra.mxu0 0
  %485 = vmatpush.bf16.msra.mxu0 %v476
  %486 = vmatmul.bf16.gmra.mxu0 %v473
  %v487 = vpop.f32.mrf.mxu0
  %v488 = vadd.f32 0.0, %v487
  %v489 = vpop.f32.mrf.mxu0
  %490 = vdwg.mxu0
  %491 = vrot.lane.b32.xlu0 %v251, 112
  %v492 = vpop.permute.xlu0 %491
  %493 = vrot.lane.b32.xlu0 %v251, 80
  %v494 = vpop.permute.xlu0 %493
  %v496 = vsel %vm254, %v492, 0
  %v499 = vsel %vm254, %v494, 0
  %501 = vmatpush.bf16.xpose.msra.mxu0 0
  %502 = vmatpush.bf16.xpose.msra.mxu0 0
  %503 = vmatpush.bf16.xpose.msra.mxu0 0
  %504 = vmatpush.bf16.xpose.msra.mxu0 0
  %505 = vmatpush.bf16.xpose.msra.mxu0 0
  %506 = vmatpush.bf16.xpose.msra.mxu0 0
  %507 = vmatpush.bf16.xpose.msra.mxu0 0
  %508 = vmatpush.bf16.xpose.msra.mxu0 %v499
  %509 = vmatmul.bf16.gmra.mxu0 %v496
  %v510 = vpop.f32.mrf.mxu0
  %v511 = vadd.f32 0.0, %v510
  %v512 = vpop.f32.mrf.mxu0
  %513 = vdwg.mxu0
  %514 = vrot.lane.b32.xlu0 %v276, 112
  %v515 = vpop.permute.xlu0 %514
  %516 = vrot.lane.b32.xlu0 %v276, 80
  %v517 = vpop.permute.xlu0 %516
  %v519 = vsel %vm254, %v515, 0
  %v522 = vsel %vm254, %v517, 0
  %524 = vmatpush.bf16.xpose.msra.mxu0 0
  %525 = vmatpush.bf16.xpose.msra.mxu0 0
  %526 = vmatpush.bf16.xpose.msra.mxu0 0
  %527 = vmatpush.bf16.xpose.msra.mxu0 0
  %528 = vmatpush.bf16.xpose.msra.mxu0 0
  %529 = vmatpush.bf16.xpose.msra.mxu0 0
  %530 = vmatpush.bf16.xpose.msra.mxu0 0
  %531 = vmatpush.bf16.xpose.msra.mxu0 %v522
  %532 = vmatmul.bf16.gmra.mxu0 %v519
  %v533 = vpop.f32.mrf.mxu0
  %v534 = vadd.f32 0.0, %v533
  %v535 = vpop.f32.mrf.mxu0
  %536 = vdwg.mxu0
  %v537 = vmul.f32 %v511, 0.35355338
  %v538 = vmul.f32 %v534, 0.35355338
  %v539 = vadd.f32 %v537, %v302
  %v540 = vadd.f32 %v538, %v303
  %v541 = vsel %vm254, %v539, -inf
  %542 = vmax.xlane.f32.xlu0 %v541
  %v543 = vpop.xlane.xlu0 %542
  %v544 = vsel %vm254, %v540, -inf
  %545 = vmax.xlane.f32.xlu0 %v544
  %v546 = vpop.xlane.xlu0 %545
  %v547 = vsub.f32 %v539, %v543
  %v548 = vsub.f32 %v540, %v546
  %v549 = vmul.f32 %v547, 1.442695
  %v550 = vpow.pop %v549
  %v551 = vmul.f32 %v548, 1.442695
  %v552 = vpow.pop %v551
  %v553 = vsel %vm254, %v550, 0.0
  %554 = vadd.xlane.f32.xlu0 %v553
  %v555 = vpop.xlane.xlu0 %554
  %v556 = vsel %vm254, %v552, 0.0
  %557 = vadd.xlane.f32.xlu0 %v556
  %v558 = vpop.xlane.xlu0 %557
  %v559 = vrcp.pop %v555
  %v560 = vrcp.pop %v558
  %v561 = vmul.f32 %v550, %v559
  %v562 = vmul.f32 %v552, %v560
  %v563 = vpack.c.bf16 %v561, %v561
  %v564 = vpack.c.bf16 %v562, %v562
  %565 = vrot.lane.b32.xlu0 %v251, 48
  %v566 = vpop.permute.xlu0 %565
  %v568 = vsel %vm254, %v563, 0
  %v571 = vsel %vm337, %v566, 0
  %573 = vmatpush.bf16.msra.mxu0 0
  %574 = vmatpush.bf16.msra.mxu0 0
  %575 = vmatpush.bf16.msra.mxu0 0
  %576 = vmatpush.bf16.msra.mxu0 0
  %577 = vmatpush.bf16.msra.mxu0 0
  %578 = vmatpush.bf16.msra.mxu0 0
  %579 = vmatpush.bf16.msra.mxu0 0
  %580 = vmatpush.bf16.msra.mxu0 %v571
  %581 = vmatmul.bf16.gmra.mxu0 %v568
  %v582 = vpop.f32.mrf.mxu0
  %v583 = vadd.f32 0.0, %v582
  %v584 = vpop.f32.mrf.mxu0
  %585 = vdwg.mxu0
  %586 = vrot.lane.b32.xlu0 %v276, 48
  %v587 = vpop.permute.xlu0 %586
  %v589 = vsel %vm254, %v564, 0
  %v592 = vsel %vm337, %v587, 0
  %594 = vmatpush.bf16.msra.mxu0 0
  %595 = vmatpush.bf16.msra.mxu0 0
  %596 = vmatpush.bf16.msra.mxu0 0
  %597 = vmatpush.bf16.msra.mxu0 0
  %598 = vmatpush.bf16.msra.mxu0 0
  %599 = vmatpush.bf16.msra.mxu0 0
  %600 = vmatpush.bf16.msra.mxu0 0
  %601 = vmatpush.bf16.msra.mxu0 %v592
  %602 = vmatmul.bf16.gmra.mxu0 %v589
  %v603 = vpop.f32.mrf.mxu0
  %v604 = vadd.f32 0.0, %v603
  %v605 = vpop.f32.mrf.mxu0
  %606 = vdwg.mxu0
  %607 = vrot.lane.b32.xlu0 %v251, 104
  %v608 = vpop.permute.xlu0 %607
  %609 = vrot.lane.b32.xlu0 %v251, 72
  %v610 = vpop.permute.xlu0 %609
  %v612 = vsel %vm254, %v608, 0
  %v615 = vsel %vm254, %v610, 0
  %617 = vmatpush.bf16.xpose.msra.mxu0 0
  %618 = vmatpush.bf16.xpose.msra.mxu0 0
  %619 = vmatpush.bf16.xpose.msra.mxu0 0
  %620 = vmatpush.bf16.xpose.msra.mxu0 0
  %621 = vmatpush.bf16.xpose.msra.mxu0 0
  %622 = vmatpush.bf16.xpose.msra.mxu0 0
  %623 = vmatpush.bf16.xpose.msra.mxu0 0
  %624 = vmatpush.bf16.xpose.msra.mxu0 %v615
  %625 = vmatmul.bf16.gmra.mxu0 %v612
  %v626 = vpop.f32.mrf.mxu0
  %v627 = vadd.f32 0.0, %v626
  %v628 = vpop.f32.mrf.mxu0
  %629 = vdwg.mxu0
  %630 = vrot.lane.b32.xlu0 %v276, 104
  %v631 = vpop.permute.xlu0 %630
  %632 = vrot.lane.b32.xlu0 %v276, 72
  %v633 = vpop.permute.xlu0 %632
  %v635 = vsel %vm254, %v631, 0
  %v638 = vsel %vm254, %v633, 0
  %640 = vmatpush.bf16.xpose.msra.mxu0 0
  %641 = vmatpush.bf16.xpose.msra.mxu0 0
  %642 = vmatpush.bf16.xpose.msra.mxu0 0
  %643 = vmatpush.bf16.xpose.msra.mxu0 0
  %644 = vmatpush.bf16.xpose.msra.mxu0 0
  %645 = vmatpush.bf16.xpose.msra.mxu0 0
  %646 = vmatpush.bf16.xpose.msra.mxu0 0
  %647 = vmatpush.bf16.xpose.msra.mxu0 %v638
  %648 = vmatmul.bf16.gmra.mxu0 %v635
  %v649 = vpop.f32.mrf.mxu0
  %v650 = vadd.f32 0.0, %v649
  %v651 = vpop.f32.mrf.mxu0
  %652 = vdwg.mxu0
  %v653 = vmul.f32 %v627, 0.35355338
  %v654 = vmul.f32 %v650, 0.35355338
  %v655 = vadd.f32 %v653, %v302
  %v656 = vadd.f32 %v654, %v303
  %v657 = vsel %vm254, %v655, -inf
  %658 = vmax.xlane.f32.xlu0 %v657
  %v659 = vpop.xlane.xlu0 %658
  %v660 = vsel %vm254, %v656, -inf
  %661 = vmax.xlane.f32.xlu0 %v660
  %v662 = vpop.xlane.xlu0 %661
  %v663 = vsub.f32 %v655, %v659
  %v664 = vsub.f32 %v656, %v662
  %v665 = vmul.f32 %v663, 1.442695
  %v666 = vpow.pop %v665
  %v667 = vmul.f32 %v664, 1.442695
  %v668 = vpow.pop %v667
  %v669 = vsel %vm254, %v666, 0.0
  %670 = vadd.xlane.f32.xlu0 %v669
  %v671 = vpop.xlane.xlu0 %670
  %v672 = vsel %vm254, %v668, 0.0
  %673 = vadd.xlane.f32.xlu0 %v672
  %v674 = vpop.xlane.xlu0 %673
  %v675 = vrcp.pop %v671
  %v676 = vrcp.pop %v674
  %v677 = vmul.f32 %v666, %v675
  %v678 = vmul.f32 %v668, %v676
  %v679 = vpack.c.bf16 %v677, %v677
  %v680 = vpack.c.bf16 %v678, %v678
  %681 = vrot.lane.b32.xlu0 %v251, 40
  %v682 = vpop.permute.xlu0 %681
  %v684 = vsel %vm254, %v679, 0
  %v687 = vsel %vm337, %v682, 0
  %689 = vmatpush.bf16.msra.mxu0 0
  %690 = vmatpush.bf16.msra.mxu0 0
  %691 = vmatpush.bf16.msra.mxu0 0
  %692 = vmatpush.bf16.msra.mxu0 0
  %693 = vmatpush.bf16.msra.mxu0 0
  %694 = vmatpush.bf16.msra.mxu0 0
  %695 = vmatpush.bf16.msra.mxu0 0
  %696 = vmatpush.bf16.msra.mxu0 %v687
  %697 = vmatmul.bf16.gmra.mxu0 %v684
  %v698 = vpop.f32.mrf.mxu0
  %v699 = vadd.f32 0.0, %v698
  %v700 = vpop.f32.mrf.mxu0
  %701 = vdwg.mxu0
  %702 = vrot.lane.b32.xlu0 %v276, 40
  %v703 = vpop.permute.xlu0 %702
  %v705 = vsel %vm254, %v680, 0
  %v708 = vsel %vm337, %v703, 0
  %710 = vmatpush.bf16.msra.mxu0 0
  %711 = vmatpush.bf16.msra.mxu0 0
  %712 = vmatpush.bf16.msra.mxu0 0
  %713 = vmatpush.bf16.msra.mxu0 0
  %714 = vmatpush.bf16.msra.mxu0 0
  %715 = vmatpush.bf16.msra.mxu0 0
  %716 = vmatpush.bf16.msra.mxu0 0
  %717 = vmatpush.bf16.msra.mxu0 %v708
  %718 = vmatmul.bf16.gmra.mxu0 %v705
  %v719 = vpop.f32.mrf.mxu0
  %v720 = vadd.f32 0.0, %v719
  %v721 = vpop.f32.mrf.mxu0
  %722 = vdwg.mxu0
  %725 = vrot.lane.b32.xlu0 %v467, 8
  %v726 = vpop.permute.xlu0 %725
  %727 = vrot.lane.b32.xlu0 %v488, 8
  %v728 = vpop.permute.xlu0 %727
  %733 = vrot.lane.b32.xlu0 %v583, 16
  %v734 = vpop.permute.xlu0 %733
  %735 = vrot.lane.b32.xlu0 %v604, 16
  %v736 = vpop.permute.xlu0 %735
  %741 = vrot.lane.b32.xlu0 %v699, 24
  %v742 = vpop.permute.xlu0 %741
  %743 = vrot.lane.b32.xlu0 %v720, 24
  %v744 = vpop.permute.xlu0 %743
  %v747 = vsel %vm254, %v351, %v726
  %v748 = vsel %vm254, %v372, %v728
  %vm749 = vcmask 130048
  %v750 = vsel %vm749, %v747, %v734
  %v751 = vsel %vm749, %v748, %v736
  %vm752 = vcmask 195584
  %v753 = vsel %vm752, %v750, %v742
  %v754 = vsel %vm752, %v751, %v744
  %v755 = vpack.c.bf16 %v754, %v753
  %v756 = vld [vmem:[%s9] sm:$0xf]
  %v757 = vld [vmem:[%s9 + $0x4] sm:$0xf]
  %v758 = vld [vmem:[%s9 + $0x8] sm:$0xf]
  %v759 = vld [vmem:[%s9 + $0xc] sm:$0xf]
  %v760 = vld [vmem:[%s10] sm:$0x1]
  %v762 = vperm.slane %v760, 0
  %v768 = vunpack.c.l.b16 %v756
  %v769 = vunpack.c.l.b16 %v757
  %v770 = vunpack.c.l.b16 %v758
  %v771 = vunpack.c.l.b16 %v759
  %v772 = vpack.c.b16 %v769, %v768
  %v773 = vpack.c.b16 %v771, %v770
  %v777 = vsel %vm139, %v755, 0
  %779 = vmatpush.bf16.msra.mxu0 0
  %780 = vmatpush.bf16.msra.mxu0 0
  %781 = vmatpush.bf16.msra.mxu0 0
  %782 = vmatpush.bf16.msra.mxu0 0
  %783 = vmatpush.bf16.msra.mxu0 0
  %784 = vmatpush.bf16.msra.mxu0 0
  %785 = vmatpush.bf16.msra.mxu0 %v773
  %786 = vmatpush.bf16.msra.mxu0 %v772
  %787 = vmatmul.bf16.gmra.mxu0 %v777
  %v788 = vpop.f32.mrf.mxu0
  %v789 = vadd.f32 %v762, %v788
  %v790 = vpop.f32.mrf.mxu0
  %v791 = vadd.f32 %v762, %v790
  %792 = vdwg.mxu0
  %v793 = vadd.f32 %v789, %v199
  %v794 = vadd.f32 %v791, %v200
  %v795 = vld [vmem:[%s11] sm:$0x1]
  %v796 = vld [vmem:[%s12] sm:$0x1]
  %v797 = vsel %vm139, %v793, 0.0
  %798 = vadd.xlane.f32.xlu0 %v797
  %v799 = vpop.xlane.xlu0 %798
  %v800 = vsel %vm139, %v794, 0.0
  %801 = vadd.xlane.f32.xlu0 %v800
  %v802 = vpop.xlane.xlu0 %801
  %v803 = vmul.f32 %v799, %v152
  %v804 = vmul.f32 %v802, %v152
  %v805 = vsub.f32 %v793, %v803
  %v806 = vsub.f32 %v794, %v804
  %v807 = vmul.f32 %v805, %v805
  %v808 = vmul.f32 %v806, %v806
  %v809 = vsel %vm139, %v807, 0.0
  %810 = vadd.xlane.f32.xlu0 %v809
  %v811 = vpop.xlane.xlu0 %810
  %v812 = vsel %vm139, %v808, 0.0
  %813 = vadd.xlane.f32.xlu0 %v812
  %v814 = vpop.xlane.xlu0 %813
  %v815 = vmul.f32 %v811, %v152
  %v816 = vmul.f32 %v814, %v152
  %v817 = vadd.f32 %v815, 1e-12
  %v818 = vadd.f32 %v816, 1e-12
  %v819 = vrsqrt.pop %v817
  %v820 = vmul.f32 %v819, %v817
  %v821 = vmul.f32 %v820, %v819
  %v822 = vmul.f32 0.5, %v821
  %v823 = vsub.f32 1.5, %v822
  %v824 = vmul.f32 %v819, %v823
  %vm825 = vweird.f32 %v817
  %vm826 = vweird.f32 %v819
  %vm827 = vmor %vm825, %vm826
  %v828 = vsel %vm827, %v819, %v824
  %v829 = vrsqrt.pop %v818
  %v830 = vmul.f32 %v829, %v818
  %v831 = vmul.f32 %v830, %v829
  %v832 = vmul.f32 0.5, %v831
  %v833 = vsub.f32 1.5, %v832
  %v834 = vmul.f32 %v829, %v833
  %vm835 = vweird.f32 %v818
  %vm836 = vweird.f32 %v829
  %vm837 = vmor %vm835, %vm836
  %v838 = vsel %vm837, %v829, %v834
  %v839 = vmul.f32 %v805, %v828
  %v840 = vmul.f32 %v806, %v838
  %v842 = vperm.slane %v795, 0
  %v844 = vmul.f32 %v839, %v842
  %v845 = vmul.f32 %v840, %v842
  %v847 = vperm.slane %v796, 0
  %v849 = vadd.f32 %v844, %v847
  %v850 = vadd.f32 %v845, %v847
  %v851 = vpack.c.bf16 %v850, %v849
  %v852 = vld [vmem:[%s13] sm:$0xf]
  %v853 = vld [vmem:[%s13 + $0x4] sm:$0xf]
  %v854 = vld [vmem:[%s13 + $0x8] sm:$0xf]
  %v855 = vld [vmem:[%s13 + $0xc] sm:$0xf]
  %v856 = vld [vmem:[%s14] sm:$0x1]
  %v858 = vperm.slane %v856, 0
  %v864 = vunpack.c.l.b16 %v852
  %v865 = vunpack.c.l.b16 %v853
  %v866 = vunpack.c.l.b16 %v854
  %v867 = vunpack.c.l.b16 %v855
  %v868 = vpack.c.b16 %v865, %v864
  %v869 = vpack.c.b16 %v867, %v866
  %v873 = vsel %vm139, %v851, 0
  %875 = vmatpush.bf16.msra.mxu0 0
  %876 = vmatpush.bf16.msra.mxu0 0
  %877 = vmatpush.bf16.msra.mxu0 0
  %878 = vmatpush.bf16.msra.mxu0 0
  %879 = vmatpush.bf16.msra.mxu0 0
  %880 = vmatpush.bf16.msra.mxu0 0
  %881 = vmatpush.bf16.msra.mxu0 %v869
  %882 = vmatpush.bf16.msra.mxu0 %v868
  %883 = vmatmul.bf16.gmra.mxu0 %v873
  %v884 = vpop.f32.mrf.mxu0
  %v885 = vadd.f32 %v858, %v884
  %v886 = vpop.f32.mrf.mxu0
  %v887 = vadd.f32 %v858, %v886
  %888 = vdwg.mxu0
  %v889 = vmul.f32 %v885, 0.5
  %v890 = vmul.f32 %v887, 0.5
  %v891 = vmul.f32 %v885, 0.044715
  %v892 = vmul.f32 %v887, 0.044715
  %v893 = vmul.f32 %v891, %v885
  %v894 = vmul.f32 %v892, %v887
  %v895 = vmul.f32 %v893, %v885
  %v896 = vmul.f32 %v894, %v887
  %v897 = vadd.f32 %v885, %v895
  %v898 = vadd.f32 %v887, %v896
  %v899 = vmul.f32 %v897, 0.7978846
  %v900 = vmul.f32 %v898, 0.7978846
  %v901 = vtanh.pop %v899
  %v902 = vtanh.pop %v900
  %v903 = vadd.f32 %v901, 1.0
  %v904 = vadd.f32 %v902, 1.0
  %v905 = vmul.f32 %v889, %v903
  %v906 = vmul.f32 %v890, %v904
  %v907 = vpack.c.bf16 %v906, %v905
  %v908 = vld [vmem:[%s15] sm:$0xf]
  %v909 = vld [vmem:[%s15 + $0x4] sm:$0xf]
  %v910 = vld [vmem:[%s15 + $0x8] sm:$0xf]
  %v911 = vld [vmem:[%s15 + $0xc] sm:$0xf]
  %v912 = vld [vmem:[%s15 + $0x10] sm:$0xf]
  %v913 = vld [vmem:[%s15 + $0x14] sm:$0xf]
  %v914 = vld [vmem:[%s15 + $0x18] sm:$0xf]
  %v915 = vld [vmem:[%s15 + $0x1c] sm:$0xf]
  %v916 = vld [vmem:[%s16] sm:$0x1]
  %v918 = vperm.slane %v916, 0
  %v928 = vunpack.c.l.b16 %v908
  %v929 = vunpack.c.l.b16 %v909
  %v930 = vunpack.c.l.b16 %v910
  %v931 = vunpack.c.l.b16 %v911
  %v932 = vunpack.c.l.b16 %v912
  %v933 = vunpack.c.l.b16 %v913
  %v934 = vunpack.c.l.b16 %v914
  %v935 = vunpack.c.l.b16 %v915
  %v936 = vpack.c.b16 %v929, %v928
  %v937 = vpack.c.b16 %v931, %v930
  %v938 = vpack.c.b16 %v933, %v932
  %v939 = vpack.c.b16 %v935, %v934
  %vm944 = vcmask 523264
  %v946 = vsel %vm944, %v907, 0
  %948 = vmatpush.bf16.msra.mxu0 0
  %949 = vmatpush.bf16.msra.mxu0 0
  %950 = vmatpush.bf16.msra.mxu0 0
  %951 = vmatpush.bf16.msra.mxu0 0
  %952 = vmatpush.bf16.msra.mxu0 %v939
  %953 = vmatpush.bf16.msra.mxu0 %v938
  %954 = vmatpush.bf16.msra.mxu0 %v937
  %955 = vmatpush.bf16.msra.mxu0 %v936
  %956 = vmatmul.bf16.gmra.mxu0 %v946
  %v957 = vpop.f32.mrf.mxu0
  %v958 = vadd.f32 %v918, %v957
  %v959 = vpop.f32.mrf.mxu0
  %v960 = vadd.f32 %v918, %v959
  %961 = vdwg.mxu0
  %v962 = vadd.f32 %v958, %v849
  %v963 = vadd.f32 %v960, %v850
  %v964 = vld [vmem:[%s17] sm:$0x1]
  %v965 = vld [vmem:[%s18] sm:$0x1]
  %v966 = vsel %vm139, %v962, 0.0
  %967 = vadd.xlane.f32.xlu0 %v966
  %v968 = vpop.xlane.xlu0 %967
  %v969 = vsel %vm139, %v963, 0.0
  %970 = vadd.xlane.f32.xlu0 %v969
  %v971 = vpop.xlane.xlu0 %970
  %v972 = vmul.f32 %v968, %v152
  %v973 = vmul.f32 %v971, %v152
  %v974 = vsub.f32 %v962, %v972
  %v975 = vsub.f32 %v963, %v973
  %v976 = vmul.f32 %v974, %v974
  %v977 = vmul.f32 %v975, %v975
  %v978 = vsel %vm139, %v976, 0.0
  %979 = vadd.xlane.f32.xlu0 %v978
  %v980 = vpop.xlane.xlu0 %979
  %v981 = vsel %vm139, %v977, 0.0
  %982 = vadd.xlane.f32.xlu0 %v981
  %v983 = vpop.xlane.xlu0 %982
  %v984 = vmul.f32 %v980, %v152
  %v985 = vmul.f32 %v983, %v152
  %v986 = vadd.f32 %v984, 1e-12
  %v987 = vadd.f32 %v985, 1e-12
  %v988 = vrsqrt.pop %v986
  %v989 = vmul.f32 %v988, %v986
  %v990 = vmul.f32 %v989, %v988
  %v991 = vmul.f32 0.5, %v990
  %v992 = vsub.f32 1.5, %v991
  %v993 = vmul.f32 %v988, %v992
  %vm994 = vweird.f32 %v986
  %vm995 = vweird.f32 %v988
  %vm996 = vmor %vm994, %vm995
  %v997 = vsel %vm996, %v988, %v993
  %v998 = vrsqrt.pop %v987
  %v999 = vmul.f32 %v998, %v987
  %v1000 = vmul.f32 %v999, %v998
  %v1001 = vmul.f32 0.5, %v1000
  %v1002 = vsub.f32 1.5, %v1001
  %v1003 = vmul.f32 %v998, %v1002
  %vm1004 = vweird.f32 %v987
  %vm1005 = vweird.f32 %v998
  %vm1006 = vmor %vm1004, %vm1005
  %v1007 = vsel %vm1006, %v998, %v1003
  %v1008 = vmul.f32 %v974, %v997
  %v1009 = vmul.f32 %v975, %v1007
  %v1011 = vperm.slane %v964, 0
  %v1013 = vmul.f32 %v1008, %v1011
  %v1014 = vmul.f32 %v1009, %v1011
  %v1016 = vperm.slane %v965, 0
  %v1018 = vadd.f32 %v1013, %v1016
  %v1019 = vadd.f32 %v1014, %v1016
  %v1020 = vpack.c.bf16 %v1019, %v1018
  %s1021 = scalar_lea.vmem %s7, 16
  %v1022 = vld [vmem:[%s1021] sm:$0xf]
  %v1023 = vld [vmem:[%s1021 + $0x4] sm:$0xf]
  %v1024 = vld [vmem:[%s1021 + $0x8] sm:$0xf]
  %v1025 = vld [vmem:[%s1021 + $0xc] sm:$0xf]
  %s1026 = scalar_lea.vmem %s8, 1
  %v1027 = vld [vmem:[%s1026] sm:$0x1]
  %v1029 = vperm.slane %v1027, 0
  %v1035 = vunpack.c.l.b16 %v1022
  %v1036 = vunpack.c.l.b16 %v1023
  %v1037 = vunpack.c.l.b16 %v1024
  %v1038 = vunpack.c.l.b16 %v1025
  %v1039 = vpack.c.b16 %v1036, %v1035
  %v1040 = vpack.c.b16 %v1038, %v1037
  %v1044 = vsel %vm139, %v1020, 0
  %1046 = vmatpush.bf16.msra.mxu0 0
  %1047 = vmatpush.bf16.msra.mxu0 0
  %1048 = vmatpush.bf16.msra.mxu0 0
  %1049 = vmatpush.bf16.msra.mxu0 0
  %1050 = vmatpush.bf16.msra.mxu0 0
  %1051 = vmatpush.bf16.msra.mxu0 0
  %1052 = vmatpush.bf16.msra.mxu0 %v1040
  %1053 = vmatpush.bf16.msra.mxu0 %v1039
  %1054 = vmatmul.bf16.gmra.mxu0 %v1044
  %v1055 = vpop.f32.mrf.mxu0
  %v1056 = vadd.f32 %v1029, %v1055
  %v1057 = vpop.f32.mrf.mxu0
  %v1058 = vadd.f32 %v1029, %v1057
  %1059 = vdwg.mxu0
  %v1060 = vpack.c.bf16 %v1056, %v1056
  %v1061 = vpack.c.bf16 %v1058, %v1058
  %v1063 = vunpack.c.l.b16 %v1060
  %v1064 = vpack.c.b16 %v1063, %v1063
  %1065 = vrot.lane.b32.xlu0 %v1064, 96
  %v1066 = vpop.permute.xlu0 %1065
  %v1068 = vsel %vm254, %v1060, 0
  %v1071 = vsel %vm254, %v1066, 0
  %1073 = vmatpush.bf16.xpose.msra.mxu0 0
  %1074 = vmatpush.bf16.xpose.msra.mxu0 0
  %1075 = vmatpush.bf16.xpose.msra.mxu0 0
  %1076 = vmatpush.bf16.xpose.msra.mxu0 0
  %1077 = vmatpush.bf16.xpose.msra.mxu0 0
  %1078 = vmatpush.bf16.xpose.msra.mxu0 0
  %1079 = vmatpush.bf16.xpose.msra.mxu0 0
  %1080 = vmatpush.bf16.xpose.msra.mxu0 %v1071
  %1081 = vmatmul.bf16.gmra.mxu0 %v1068
  %v1082 = vpop.f32.mrf.mxu0
  %v1083 = vadd.f32 0.0, %v1082
  %v1084 = vpop.f32.mrf.mxu0
  %1085 = vdwg.mxu0
  %v1087 = vunpack.c.l.b16 %v1061
  %v1088 = vpack.c.b16 %v1087, %v1087
  %1089 = vrot.lane.b32.xlu0 %v1088, 96
  %v1090 = vpop.permute.xlu0 %1089
  %v1092 = vsel %vm254, %v1061, 0
  %v1095 = vsel %vm254, %v1090, 0
  %1097 = vmatpush.bf16.xpose.msra.mxu0 0
  %1098 = vmatpush.bf16.xpose.msra.mxu0 0
  %1099 = vmatpush.bf16.xpose.msra.mxu0 0
  %1100 = vmatpush.bf16.xpose.msra.mxu0 0
  %1101 = vmatpush.bf16.xpose.msra.mxu0 0
  %1102 = vmatpush.bf16.xpose.msra.mxu0 0
  %1103 = vmatpush.bf16.xpose.msra.mxu0 0
  %1104 = vmatpush.bf16.xpose.msra.mxu0 %v1095
  %1105 = vmatmul.bf16.gmra.mxu0 %v1092
  %v1106 = vpop.f32.mrf.mxu0
  %v1107 = vadd.f32 0.0, %v1106
  %v1108 = vpop.f32.mrf.mxu0
  %1109 = vdwg.mxu0
  %v1110 = vmul.f32 %v1083, 0.35355338
  %v1111 = vmul.f32 %v1107, 0.35355338
  %v1112 = vadd.f32 %v1110, %v302
  %v1113 = vadd.f32 %v1111, %v303
  %v1114 = vsel %vm254, %v1112, -inf
  %1115 = vmax.xlane.f32.xlu0 %v1114
  %v1116 = vpop.xlane.xlu0 %1115
  %v1117 = vsel %vm254, %v1113, -inf
  %1118 = vmax.xlane.f32.xlu0 %v1117
  %v1119 = vpop.xlane.xlu0 %1118
  %v1120 = vsub.f32 %v1112, %v1116
  %v1121 = vsub.f32 %v1113, %v1119
  %v1122 = vmul.f32 %v1120, 1.442695
  %v1123 = vpow.pop %v1122
  %v1124 = vmul.f32 %v1121, 1.442695
  %v1125 = vpow.pop %v1124
  %v1126 = vsel %vm254, %v1123, 0.0
  %1127 = vadd.xlane.f32.xlu0 %v1126
  %v1128 = vpop.xlane.xlu0 %1127
  %v1129 = vsel %vm254, %v1125, 0.0
  %1130 = vadd.xlane.f32.xlu0 %v1129
  %v1131 = vpop.xlane.xlu0 %1130
  %v1132 = vrcp.pop %v1128
  %v1133 = vrcp.pop %v1131
  %v1134 = vmul.f32 %v1123, %v1132
  %v1135 = vmul.f32 %v1125, %v1133
  %v1136 = vpack.c.bf16 %v1134, %v1134
  %v1137 = vpack.c.bf16 %v1135, %v1135
  %1138 = vrot.lane.b32.xlu0 %v1064, 64
  %v1139 = vpop.permute.xlu0 %1138
  %v1141 = vsel %vm254, %v1136, 0
  %v1144 = vsel %vm337, %v1139, 0
  %1146 = vmatpush.bf16.msra.mxu0 0
  %1147 = vmatpush.bf16.msra.mxu0 0
  %1148 = vmatpush.bf16.msra.mxu0 0
  %1149 = vmatpush.bf16.msra.mxu0 0
  %1150 = vmatpush.bf16.msra.mxu0 0
  %1151 = vmatpush.bf16.msra.mxu0 0
  %1152 = vmatpush.bf16.msra.mxu0 0
  %1153 = vmatpush.bf16.msra.mxu0 %v1144
  %1154 = vmatmul.bf16.gmra.mxu0 %v1141
  %v1155 = vpop.f32.mrf.mxu0
  %v1156 = vadd.f32 0.0, %v1155
  %v1157 = vpop.f32.mrf.mxu0
  %1158 = vdwg.mxu0
  %1159 = vrot.lane.b32.xlu0 %v1088, 64
  %v1160 = vpop.permute.xlu0 %1159
  %v1162 = vsel %vm254, %v1137, 0
  %v1165 = vsel %vm337, %v1160, 0
  %1167 = vmatpush.bf16.msra.mxu0 0
  %1168 = vmatpush.bf16.msra.mxu0 0
  %1169 = vmatpush.bf16.msra.mxu0 0
  %1170 = vmatpush.bf16.msra.mxu0 0
  %1171 = vmatpush.bf16.msra.mxu0 0
  %1172 = vmatpush.bf16.msra.mxu0 0
  %1173 = vmatpush.bf16.msra.mxu0 0
  %1174 = vmatpush.bf16.msra.mxu0 %v1165
  %1175 = vmatmul.bf16.gmra.mxu0 %v1162
  %v1176 = vpop.f32.mrf.mxu0
  %v1177 = vadd.f32 0.0, %v1176
  %v1178 = vpop.f32.mrf.mxu0
  %1179 = vdwg.mxu0
  %1180 = vrot.lane.b32.xlu0 %v1064, 120
  %v1181 = vpop.permute.xlu0 %1180
  %1182 = vrot.lane.b32.xlu0 %v1064, 88
  %v1183 = vpop.permute.xlu0 %1182
  %v1185 = vsel %vm254, %v1181, 0
  %v1188 = vsel %vm254, %v1183, 0
  %1190 = vmatpush.bf16.xpose.msra.mxu0 0
  %1191 = vmatpush.bf16.xpose.msra.mxu0 0
  %1192 = vmatpush.bf16.xpose.msra.mxu0 0
  %1193 = vmatpush.bf16.xpose.msra.mxu0 0
  %1194 = vmatpush.bf16.xpose.msra.mxu0 0
  %1195 = vmatpush.bf16.xpose.msra.mxu0 0
  %1196 = vmatpush.bf16.xpose.msra.mxu0 0
  %1197 = vmatpush.bf16.xpose.msra.mxu0 %v1188
  %1198 = vmatmul.bf16.gmra.mxu0 %v1185
  %v1199 = vpop.f32.mrf.mxu0
  %v1200 = vadd.f32 0.0, %v1199
  %v1201 = vpop.f32.mrf.mxu0
  %1202 = vdwg.mxu0
  %1203 = vrot.lane.b32.xlu0 %v1088, 120
  %v1204 = vpop.permute.xlu0 %1203
  %1205 = vrot.lane.b32.xlu0 %v1088, 88
  %v1206 = vpop.permute.xlu0 %1205
  %v1208 = vsel %vm254, %v1204, 0
  %v1211 = vsel %vm254, %v1206, 0
  %1213 = vmatpush.bf16.xpose.msra.mxu0 0
  %1214 = vmatpush.bf16.xpose.msra.mxu0 0
  %1215 = vmatpush.bf16.xpose.msra.mxu0 0
  %1216 = vmatpush.bf16.xpose.msra.mxu0 0
  %1217 = vmatpush.bf16.xpose.msra.mxu0 0
  %1218 = vmatpush.bf16.xpose.msra.mxu0 0
  %1219 = vmatpush.bf16.xpose.msra.mxu0 0
  %1220 = vmatpush.bf16.xpose.msra.mxu0 %v1211
  %1221 = vmatmul.bf16.gmra.mxu0 %v1208
  %v1222 = vpop.f32.mrf.mxu0
  %v1223 = vadd.f32 0.0, %v1222
  %v1224 = vpop.f32.mrf.mxu0
  %1225 = vdwg.mxu0
  %v1226 = vmul.f32 %v1200, 0.35355338
  %v1227 = vmul.f32 %v1223, 0.35355338
  %v1228 = vadd.f32 %v1226, %v302
  %v1229 = vadd.f32 %v1227, %v303
  %v1230 = vsel %vm254, %v1228, -inf
  %1231 = vmax.xlane.f32.xlu0 %v1230
  %v1232 = vpop.xlane.xlu0 %1231
  %v1233 = vsel %vm254, %v1229, -inf
  %1234 = vmax.xlane.f32.xlu0 %v1233
  %v1235 = vpop.xlane.xlu0 %1234
  %v1236 = vsub.f32 %v1228, %v1232
  %v1237 = vsub.f32 %v1229, %v1235
  %v1238 = vmul.f32 %v1236, 1.442695
  %v1239 = vpow.pop %v1238
  %v1240 = vmul.f32 %v1237, 1.442695
  %v1241 = vpow.pop %v1240
  %v1242 = vsel %vm254, %v1239, 0.0
  %1243 = vadd.xlane.f32.xlu0 %v1242
  %v1244 = vpop.xlane.xlu0 %1243
  %v1245 = vsel %vm254, %v1241, 0.0
  %1246 = vadd.xlane.f32.xlu0 %v1245
  %v1247 = vpop.xlane.xlu0 %1246
  %v1248 = vrcp.pop %v1244
  %v1249 = vrcp.pop %v1247
  %v1250 = vmul.f32 %v1239, %v1248
  %v1251 = vmul.f32 %v1241, %v1249
  %v1252 = vpack.c.bf16 %v1250, %v1250
  %v1253 = vpack.c.bf16 %v1251, %v1251
  %1254 = vrot.lane.b32.xlu0 %v1064, 56
  %v1255 = vpop.permute.xlu0 %1254
  %v1257 = vsel %vm254, %v1252, 0
  %v1260 = vsel %vm337, %v1255, 0
  %1262 = vmatpush.bf16.msra.mxu0 0
  %1263 = vmatpush.bf16.msra.mxu0 0
  %1264 = vmatpush.bf16.msra.mxu0 0
  %1265 = vmatpush.bf16.msra.mxu0 0
  %1266 = vmatpush.bf16.msra.mxu0 0
  %1267 = vmatpush.bf16.msra.mxu0 0
  %1268 = vmatpush.bf16.msra.mxu0 0
  %1269 = vmatpush.bf16.msra.mxu0 %v1260
  %1270 = vmatmul.bf16.gmra.mxu0 %v1257
  %v1271 = vpop.f32.mrf.mxu0
  %v1272 = vadd.f32 0.0, %v1271
  %v1273 = vpop.f32.mrf.mxu0
  %1274 = vdwg.mxu0
  %1275 = vrot.lane.b32.xlu0 %v1088, 56
  %v1276 = vpop.permute.xlu0 %1275
  %v1278 = vsel %vm254, %v1253, 0
  %v1281 = vsel %vm337, %v1276, 0
  %1283 = vmatpush.bf16.msra.mxu0 0
  %1284 = vmatpush.bf16.msra.mxu0 0
  %1285 = vmatpush.bf16.msra.mxu0 0
  %1286 = vmatpush.bf16.msra.mxu0 0
  %1287 = vmatpush.bf16.msra.mxu0 0
  %1288 = vmatpush.bf16.msra.mxu0 0
  %1289 = vmatpush.bf16.msra.mxu0 0
  %1290 = vmatpush.bf16.msra.mxu0 %v1281
  %1291 = vmatmul.bf16.gmra.mxu0 %v1278
  %v1292 = vpop.f32.mrf.mxu0
  %v1293 = vadd.f32 0.0, %v1292
  %v1294 = vpop.f32.mrf.mxu0
  %1295 = vdwg.mxu0
  %1296 = vrot.lane.b32.xlu0 %v1064, 112
  %v1297 = vpop.permute.xlu0 %1296
  %1298 = vrot.lane.b32.xlu0 %v1064, 80
  %v1299 = vpop.permute.xlu0 %1298
  %v1301 = vsel %vm254, %v1297, 0
  %v1304 = vsel %vm254, %v1299, 0
  %1306 = vmatpush.bf16.xpose.msra.mxu0 0
  %1307 = vmatpush.bf16.xpose.msra.mxu0 0
  %1308 = vmatpush.bf16.xpose.msra.mxu0 0
  %1309 = vmatpush.bf16.xpose.msra.mxu0 0
  %1310 = vmatpush.bf16.xpose.msra.mxu0 0
  %1311 = vmatpush.bf16.xpose.msra.mxu0 0
  %1312 = vmatpush.bf16.xpose.msra.mxu0 0
  %1313 = vmatpush.bf16.xpose.msra.mxu0 %v1304
  %1314 = vmatmul.bf16.gmra.mxu0 %v1301
  %v1315 = vpop.f32.mrf.mxu0
  %v1316 = vadd.f32 0.0, %v1315
  %v1317 = vpop.f32.mrf.mxu0
  %1318 = vdwg.mxu0
  %1319 = vrot.lane.b32.xlu0 %v1088, 112
  %v1320 = vpop.permute.xlu0 %1319
  %1321 = vrot.lane.b32.xlu0 %v1088, 80
  %v1322 = vpop.permute.xlu0 %1321
  %v1324 = vsel %vm254, %v1320, 0
  %v1327 = vsel %vm254, %v1322, 0
  %1329 = vmatpush.bf16.xpose.msra.mxu0 0
  %1330 = vmatpush.bf16.xpose.msra.mxu0 0
  %1331 = vmatpush.bf16.xpose.msra.mxu0 0
  %1332 = vmatpush.bf16.xpose.msra.mxu0 0
  %1333 = vmatpush.bf16.xpose.msra.mxu0 0
  %1334 = vmatpush.bf16.xpose.msra.mxu0 0
  %1335 = vmatpush.bf16.xpose.msra.mxu0 0
  %1336 = vmatpush.bf16.xpose.msra.mxu0 %v1327
  %1337 = vmatmul.bf16.gmra.mxu0 %v1324
  %v1338 = vpop.f32.mrf.mxu0
  %v1339 = vadd.f32 0.0, %v1338
  %v1340 = vpop.f32.mrf.mxu0
  %1341 = vdwg.mxu0
  %v1342 = vmul.f32 %v1316, 0.35355338
  %v1343 = vmul.f32 %v1339, 0.35355338
  %v1344 = vadd.f32 %v1342, %v302
  %v1345 = vadd.f32 %v1343, %v303
  %v1346 = vsel %vm254, %v1344, -inf
  %1347 = vmax.xlane.f32.xlu0 %v1346
  %v1348 = vpop.xlane.xlu0 %1347
  %v1349 = vsel %vm254, %v1345, -inf
  %1350 = vmax.xlane.f32.xlu0 %v1349
  %v1351 = vpop.xlane.xlu0 %1350
  %v1352 = vsub.f32 %v1344, %v1348
  %v1353 = vsub.f32 %v1345, %v1351
  %v1354 = vmul.f32 %v1352, 1.442695
  %v1355 = vpow.pop %v1354
  %v1356 = vmul.f32 %v1353, 1.442695
  %v1357 = vpow.pop %v1356
  %v1358 = vsel %vm254, %v1355, 0.0
  %1359 = vadd.xlane.f32.xlu0 %v1358
  %v1360 = vpop.xlane.xlu0 %1359
  %v1361 = vsel %vm254, %v1357, 0.0
  %1362 = vadd.xlane.f32.xlu0 %v1361
  %v1363 = vpop.xlane.xlu0 %1362
  %v1364 = vrcp.pop %v1360
  %v1365 = vrcp.pop %v1363
  %v1366 = vmul.f32 %v1355, %v1364
  %v1367 = vmul.f32 %v1357, %v1365
  %v1368 = vpack.c.bf16 %v1366, %v1366
  %v1369 = vpack.c.bf16 %v1367, %v1367
  %1370 = vrot.lane.b32.xlu0 %v1064, 48
  %v1371 = vpop.permute.xlu0 %1370
  %v1373 = vsel %vm254, %v1368, 0
  %v1376 = vsel %vm337, %v1371, 0
  %1378 = vmatpush.bf16.msra.mxu0 0
  %1379 = vmatpush.bf16.msra.mxu0 0
  %1380 = vmatpush.bf16.msra.mxu0 0
  %1381 = vmatpush.bf16.msra.mxu0 0
  %1382 = vmatpush.bf16.msra.mxu0 0
  %1383 = vmatpush.bf16.msra.mxu0 0
  %1384 = vmatpush.bf16.msra.mxu0 0
  %1385 = vmatpush.bf16.msra.mxu0 %v1376
  %1386 = vmatmul.bf16.gmra.mxu0 %v1373
  %v1387 = vpop.f32.mrf.mxu0
  %v1388 = vadd.f32 0.0, %v1387
  %v1389 = vpop.f32.mrf.mxu0
  %1390 = vdwg.mxu0
  %1391 = vrot.lane.b32.xlu0 %v1088, 48
  %v1392 = vpop.permute.xlu0 %1391
  %v1394 = vsel %vm254, %v1369, 0
  %v1397 = vsel %vm337, %v1392, 0
  %1399 = vmatpush.bf16.msra.mxu0 0
  %1400 = vmatpush.bf16.msra.mxu0 0
  %1401 = vmatpush.bf16.msra.mxu0 0
  %1402 = vmatpush.bf16.msra.mxu0 0
  %1403 = vmatpush.bf16.msra.mxu0 0
  %1404 = vmatpush.bf16.msra.mxu0 0
  %1405 = vmatpush.bf16.msra.mxu0 0
  %1406 = vmatpush.bf16.msra.mxu0 %v1397
  %1407 = vmatmul.bf16.gmra.mxu0 %v1394
  %v1408 = vpop.f32.mrf.mxu0
  %v1409 = vadd.f32 0.0, %v1408
  %v1410 = vpop.f32.mrf.mxu0
  %1411 = vdwg.mxu0
  %1412 = vrot.lane.b32.xlu0 %v1064, 104
  %v1413 = vpop.permute.xlu0 %1412
  %1414 = vrot.lane.b32.xlu0 %v1064, 72
  %v1415 = vpop.permute.xlu0 %1414
  %v1417 = vsel %vm254, %v1413, 0
  %v1420 = vsel %vm254, %v1415, 0
  %1422 = vmatpush.bf16.xpose.msra.mxu0 0
  %1423 = vmatpush.bf16.xpose.msra.mxu0 0
  %1424 = vmatpush.bf16.xpose.msra.mxu0 0
  %1425 = vmatpush.bf16.xpose.msra.mxu0 0
  %1426 = vmatpush.bf16.xpose.msra.mxu0 0
  %1427 = vmatpush.bf16.xpose.msra.mxu0 0
  %1428 = vmatpush.bf16.xpose.msra.mxu0 0
  %1429 = vmatpush.bf16.xpose.msra.mxu0 %v1420
  %1430 = vmatmul.bf16.gmra.mxu0 %v1417
  %v1431 = vpop.f32.mrf.mxu0
  %v1432 = vadd.f32 0.0, %v1431
  %v1433 = vpop.f32.mrf.mxu0
  %1434 = vdwg.mxu0
  %1435 = vrot.lane.b32.xlu0 %v1088, 104
  %v1436 = vpop.permute.xlu0 %1435
  %1437 = vrot.lane.b32.xlu0 %v1088, 72
  %v1438 = vpop.permute.xlu0 %1437
  %v1440 = vsel %vm254, %v1436, 0
  %v1443 = vsel %vm254, %v1438, 0
  %1445 = vmatpush.bf16.xpose.msra.mxu0 0
  %1446 = vmatpush.bf16.xpose.msra.mxu0 0
  %1447 = vmatpush.bf16.xpose.msra.mxu0 0
  %1448 = vmatpush.bf16.xpose.msra.mxu0 0
  %1449 = vmatpush.bf16.xpose.msra.mxu0 0
  %1450 = vmatpush.bf16.xpose.msra.mxu0 0
  %1451 = vmatpush.bf16.xpose.msra.mxu0 0
  %1452 = vmatpush.bf16.xpose.msra.mxu0 %v1443
  %1453 = vmatmul.bf16.gmra.mxu0 %v1440
  %v1454 = vpop.f32.mrf.mxu0
  %v1455 = vadd.f32 0.0, %v1454
  %v1456 = vpop.f32.mrf.mxu0
  %1457 = vdwg.mxu0
  %v1458 = vmul.f32 %v1432, 0.35355338
  %v1459 = vmul.f32 %v1455, 0.35355338
  %v1460 = vadd.f32 %v1458, %v302
  %v1461 = vadd.f32 %v1459, %v303
  %v1462 = vsel %vm254, %v1460, -inf
  %1463 = vmax.xlane.f32.xlu0 %v1462
  %v1464 = vpop.xlane.xlu0 %1463
  %v1465 = vsel %vm254, %v1461, -inf
  %1466 = vmax.xlane.f32.xlu0 %v1465
  %v1467 = vpop.xlane.xlu0 %1466
  %v1468 = vsub.f32 %v1460, %v1464
  %v1469 = vsub.f32 %v1461, %v1467
  %v1470 = vmul.f32 %v1468, 1.442695
  %v1471 = vpow.pop %v1470
  %v1472 = vmul.f32 %v1469, 1.442695
  %v1473 = vpow.pop %v1472
  %v1474 = vsel %vm254, %v1471, 0.0
  %1475 = vadd.xlane.f32.xlu0 %v1474
  %v1476 = vpop.xlane.xlu0 %1475
  %v1477 = vsel %vm254, %v1473, 0.0
  %1478 = vadd.xlane.f32.xlu0 %v1477
  %v1479 = vpop.xlane.xlu0 %1478
  %v1480 = vrcp.pop %v1476
  %v1481 = vrcp.pop %v1479
  %v1482 = vmul.f32 %v1471, %v1480
  %v1483 = vmul.f32 %v1473, %v1481
  %v1484 = vpack.c.bf16 %v1482, %v1482
  %v1485 = vpack.c.bf16 %v1483, %v1483
  %1486 = vrot.lane.b32.xlu0 %v1064, 40
  %v1487 = vpop.permute.xlu0 %1486
  %v1489 = vsel %vm254, %v1484, 0
  %v1492 = vsel %vm337, %v1487, 0
  %1494 = vmatpush.bf16.msra.mxu0 0
  %1495 = vmatpush.bf16.msra.mxu0 0
  %1496 = vmatpush.bf16.msra.mxu0 0
  %1497 = vmatpush.bf16.msra.mxu0 0
  %1498 = vmatpush.bf16.msra.mxu0 0
  %1499 = vmatpush.bf16.msra.mxu0 0
  %1500 = vmatpush.bf16.msra.mxu0 0
  %1501 = vmatpush.bf16.msra.mxu0 %v1492
  %1502 = vmatmul.bf16.gmra.mxu0 %v1489
  %v1503 = vpop.f32.mrf.mxu0
  %v1504 = vadd.f32 0.0, %v1503
  %v1505 = vpop.f32.mrf.mxu0
  %1506 = vdwg.mxu0
  %1507 = vrot.lane.b32.xlu0 %v1088, 40
  %v1508 = vpop.permute.xlu0 %1507
  %v1510 = vsel %vm254, %v1485, 0
  %v1513 = vsel %vm337, %v1508, 0
  %1515 = vmatpush.bf16.msra.mxu0 0
  %1516 = vmatpush.bf16.msra.mxu0 0
  %1517 = vmatpush.bf16.msra.mxu0 0
  %1518 = vmatpush.bf16.msra.mxu0 0
  %1519 = vmatpush.bf16.msra.mxu0 0
  %1520 = vmatpush.bf16.msra.mxu0 0
  %1521 = vmatpush.bf16.msra.mxu0 0
  %1522 = vmatpush.bf16.msra.mxu0 %v1513
  %1523 = vmatmul.bf16.gmra.mxu0 %v1510
  %v1524 = vpop.f32.mrf.mxu0
  %v1525 = vadd.f32 0.0, %v1524
  %v1526 = vpop.f32.mrf.mxu0
  %1527 = vdwg.mxu0
  %1530 = vrot.lane.b32.xlu0 %v1272, 8
  %v1531 = vpop.permute.xlu0 %1530
  %1532 = vrot.lane.b32.xlu0 %v1293, 8
  %v1533 = vpop.permute.xlu0 %1532
  %1538 = vrot.lane.b32.xlu0 %v1388, 16
  %v1539 = vpop.permute.xlu0 %1538
  %1540 = vrot.lane.b32.xlu0 %v1409, 16
  %v1541 = vpop.permute.xlu0 %1540
  %1546 = vrot.lane.b32.xlu0 %v1504, 24
  %v1547 = vpop.permute.xlu0 %1546
  %1548 = vrot.lane.b32.xlu0 %v1525, 24
  %v1549 = vpop.permute.xlu0 %1548
  %v1552 = vsel %vm254, %v1156, %v1531
  %v1553 = vsel %vm254, %v1177, %v1533
  %v1554 = vsel %vm749, %v1552, %v1539
  %v1555 = vsel %vm749, %v1553, %v1541
  %v1556 = vsel %vm752, %v1554, %v1547
  %v1557 = vsel %vm752, %v1555, %v1549
  %v1558 = vpack.c.bf16 %v1557, %v1556
  %s1559 = scalar_lea.vmem %s9, 16
  %v1560 = vld [vmem:[%s1559] sm:$0xf]
  %v1561 = vld [vmem:[%s1559 + $0x4] sm:$0xf]
  %v1562 = vld [vmem:[%s1559 + $0x8] sm:$0xf]
  %v1563 = vld [vmem:[%s1559 + $0xc] sm:$0xf]
  %s1564 = scalar_lea.vmem %s10, 1
  %v1565 = vld [vmem:[%s1564] sm:$0x1]
  %v1567 = vperm.slane %v1565, 0
  %v1573 = vunpack.c.l.b16 %v1560
  %v1574 = vunpack.c.l.b16 %v1561
  %v1575 = vunpack.c.l.b16 %v1562
  %v1576 = vunpack.c.l.b16 %v1563
  %v1577 = vpack.c.b16 %v1574, %v1573
  %v1578 = vpack.c.b16 %v1576, %v1575
  %v1582 = vsel %vm139, %v1558, 0
  %1584 = vmatpush.bf16.msra.mxu0 0
  %1585 = vmatpush.bf16.msra.mxu0 0
  %1586 = vmatpush.bf16.msra.mxu0 0
  %1587 = vmatpush.bf16.msra.mxu0 0
  %1588 = vmatpush.bf16.msra.mxu0 0
  %1589 = vmatpush.bf16.msra.mxu0 0
  %1590 = vmatpush.bf16.msra.mxu0 %v1578
  %1591 = vmatpush.bf16.msra.mxu0 %v1577
  %1592 = vmatmul.bf16.gmra.mxu0 %v1582
  %v1593 = vpop.f32.mrf.mxu0
  %v1594 = vadd.f32 %v1567, %v1593
  %v1595 = vpop.f32.mrf.mxu0
  %v1596 = vadd.f32 %v1567, %v1595
  %1597 = vdwg.mxu0
  %v1598 = vadd.f32 %v1594, %v1018
  %v1599 = vadd.f32 %v1596, %v1019
  %s1600 = scalar_lea.vmem %s11, 1
  %v1601 = vld [vmem:[%s1600] sm:$0x1]
  %s1602 = scalar_lea.vmem %s12, 1
  %v1603 = vld [vmem:[%s1602] sm:$0x1]
  %v1604 = vsel %vm139, %v1598, 0.0
  %1605 = vadd.xlane.f32.xlu0 %v1604
  %v1606 = vpop.xlane.xlu0 %1605
  %v1607 = vsel %vm139, %v1599, 0.0
  %1608 = vadd.xlane.f32.xlu0 %v1607
  %v1609 = vpop.xlane.xlu0 %1608
  %v1610 = vmul.f32 %v1606, %v152
  %v1611 = vmul.f32 %v1609, %v152
  %v1612 = vsub.f32 %v1598, %v1610
  %v1613 = vsub.f32 %v1599, %v1611
  %v1614 = vmul.f32 %v1612, %v1612
  %v1615 = vmul.f32 %v1613, %v1613
  %v1616 = vsel %vm139, %v1614, 0.0
  %1617 = vadd.xlane.f32.xlu0 %v1616
  %v1618 = vpop.xlane.xlu0 %1617
  %v1619 = vsel %vm139, %v1615, 0.0
  %1620 = vadd.xlane.f32.xlu0 %v1619
  %v1621 = vpop.xlane.xlu0 %1620
  %v1622 = vmul.f32 %v1618, %v152
  %v1623 = vmul.f32 %v1621, %v152
  %v1624 = vadd.f32 %v1622, 1e-12
  %v1625 = vadd.f32 %v1623, 1e-12
  %v1626 = vrsqrt.pop %v1624
  %v1627 = vmul.f32 %v1626, %v1624
  %v1628 = vmul.f32 %v1627, %v1626
  %v1629 = vmul.f32 0.5, %v1628
  %v1630 = vsub.f32 1.5, %v1629
  %v1631 = vmul.f32 %v1626, %v1630
  %vm1632 = vweird.f32 %v1624
  %vm1633 = vweird.f32 %v1626
  %vm1634 = vmor %vm1632, %vm1633
  %v1635 = vsel %vm1634, %v1626, %v1631
  %v1636 = vrsqrt.pop %v1625
  %v1637 = vmul.f32 %v1636, %v1625
  %v1638 = vmul.f32 %v1637, %v1636
  %v1639 = vmul.f32 0.5, %v1638
  %v1640 = vsub.f32 1.5, %v1639
  %v1641 = vmul.f32 %v1636, %v1640
  %vm1642 = vweird.f32 %v1625
  %vm1643 = vweird.f32 %v1636
  %vm1644 = vmor %vm1642, %vm1643
  %v1645 = vsel %vm1644, %v1636, %v1641
  %v1646 = vmul.f32 %v1612, %v1635
  %v1647 = vmul.f32 %v1613, %v1645
  %v1649 = vperm.slane %v1601, 0
  %v1651 = vmul.f32 %v1646, %v1649
  %v1652 = vmul.f32 %v1647, %v1649
  %v1654 = vperm.slane %v1603, 0
  %v1656 = vadd.f32 %v1651, %v1654
  %v1657 = vadd.f32 %v1652, %v1654
  %v1658 = vpack.c.bf16 %v1657, %v1656
  %s1659 = scalar_lea.vmem %s13, 16
  %v1660 = vld [vmem:[%s1659] sm:$0xf]
  %v1661 = vld [vmem:[%s1659 + $0x4] sm:$0xf]
  %v1662 = vld [vmem:[%s1659 + $0x8] sm:$0xf]
  %v1663 = vld [vmem:[%s1659 + $0xc] sm:$0xf]
  %s1664 = scalar_lea.vmem %s14, 1
  %v1665 = vld [vmem:[%s1664] sm:$0x1]
  %v1667 = vperm.slane %v1665, 0
  %v1673 = vunpack.c.l.b16 %v1660
  %v1674 = vunpack.c.l.b16 %v1661
  %v1675 = vunpack.c.l.b16 %v1662
  %v1676 = vunpack.c.l.b16 %v1663
  %v1677 = vpack.c.b16 %v1674, %v1673
  %v1678 = vpack.c.b16 %v1676, %v1675
  %v1682 = vsel %vm139, %v1658, 0
  %1684 = vmatpush.bf16.msra.mxu0 0
  %1685 = vmatpush.bf16.msra.mxu0 0
  %1686 = vmatpush.bf16.msra.mxu0 0
  %1687 = vmatpush.bf16.msra.mxu0 0
  %1688 = vmatpush.bf16.msra.mxu0 0
  %1689 = vmatpush.bf16.msra.mxu0 0
  %1690 = vmatpush.bf16.msra.mxu0 %v1678
  %1691 = vmatpush.bf16.msra.mxu0 %v1677
  %1692 = vmatmul.bf16.gmra.mxu0 %v1682
  %v1693 = vpop.f32.mrf.mxu0
  %v1694 = vadd.f32 %v1667, %v1693
  %v1695 = vpop.f32.mrf.mxu0
  %v1696 = vadd.f32 %v1667, %v1695
  %1697 = vdwg.mxu0
  %v1698 = vmul.f32 %v1694, 0.5
  %v1699 = vmul.f32 %v1696, 0.5
  %v1700 = vmul.f32 %v1694, 0.044715
  %v1701 = vmul.f32 %v1696, 0.044715
  %v1702 = vmul.f32 %v1700, %v1694
  %v1703 = vmul.f32 %v1701, %v1696
  %v1704 = vmul.f32 %v1702, %v1694
  %v1705 = vmul.f32 %v1703, %v1696
  %v1706 = vadd.f32 %v1694, %v1704
  %v1707 = vadd.f32 %v1696, %v1705
  %v1708 = vmul.f32 %v1706, 0.7978846
  %v1709 = vmul.f32 %v1707, 0.7978846
  %v1710 = vtanh.pop %v1708
  %v1711 = vtanh.pop %v1709
  %v1712 = vadd.f32 %v1710, 1.0
  %v1713 = vadd.f32 %v1711, 1.0
  %v1714 = vmul.f32 %v1698, %v1712
  %v1715 = vmul.f32 %v1699, %v1713
  %v1716 = vpack.c.bf16 %v1715, %v1714
  %s1717 = scalar_lea.vmem %s15, 32
  %v1718 = vld [vmem:[%s1717] sm:$0xf]
  %v1719 = vld [vmem:[%s1717 + $0x4] sm:$0xf]
  %v1720 = vld [vmem:[%s1717 + $0x8] sm:$0xf]
  %v1721 = vld [vmem:[%s1717 + $0xc] sm:$0xf]
  %v1722 = vld [vmem:[%s1717 + $0x10] sm:$0xf]
  %v1723 = vld [vmem:[%s1717 + $0x14] sm:$0xf]
  %v1724 = vld [vmem:[%s1717 + $0x18] sm:$0xf]
  %v1725 = vld [vmem:[%s1717 + $0x1c] sm:$0xf]
  %s1726 = scalar_lea.vmem %s16, 1
  %v1727 = vld [vmem:[%s1726] sm:$0x1]
  %v1729 = vperm.slane %v1727, 0
  %v1739 = vunpack.c.l.b16 %v1718
  %v1740 = vunpack.c.l.b16 %v1719
  %v1741 = vunpack.c.l.b16 %v1720
  %v1742 = vunpack.c.l.b16 %v1721
  %v1743 = vunpack.c.l.b16 %v1722
  %v1744 = vunpack.c.l.b16 %v1723
  %v1745 = vunpack.c.l.b16 %v1724
  %v1746 = vunpack.c.l.b16 %v1725
  %v1747 = vpack.c.b16 %v1740, %v1739
  %v1748 = vpack.c.b16 %v1742, %v1741
  %v1749 = vpack.c.b16 %v1744, %v1743
  %v1750 = vpack.c.b16 %v1746, %v1745
  %v1756 = vsel %vm944, %v1716, 0
  %1758 = vmatpush.bf16.msra.mxu0 0
  %1759 = vmatpush.bf16.msra.mxu0 0
  %1760 = vmatpush.bf16.msra.mxu0 0
  %1761 = vmatpush.bf16.msra.mxu0 0
  %1762 = vmatpush.bf16.msra.mxu0 %v1750
  %1763 = vmatpush.bf16.msra.mxu0 %v1749
  %1764 = vmatpush.bf16.msra.mxu0 %v1748
  %1765 = vmatpush.bf16.msra.mxu0 %v1747
  %1766 = vmatmul.bf16.gmra.mxu0 %v1756
  %v1767 = vpop.f32.mrf.mxu0
  %v1768 = vadd.f32 %v1729, %v1767
  %v1769 = vpop.f32.mrf.mxu0
  %v1770 = vadd.f32 %v1729, %v1769
  %1771 = vdwg.mxu0
  %v1772 = vadd.f32 %v1768, %v1656
  %v1773 = vadd.f32 %v1770, %v1657
  %s1774 = scalar_lea.vmem %s17, 1
  %v1775 = vld [vmem:[%s1774] sm:$0x1]
  %s1776 = scalar_lea.vmem %s18, 1
  %v1777 = vld [vmem:[%s1776] sm:$0x1]
  %v1778 = vsel %vm139, %v1772, 0.0
  %1779 = vadd.xlane.f32.xlu0 %v1778
  %v1780 = vpop.xlane.xlu0 %1779
  %v1781 = vsel %vm139, %v1773, 0.0
  %1782 = vadd.xlane.f32.xlu0 %v1781
  %v1783 = vpop.xlane.xlu0 %1782
  %v1784 = vmul.f32 %v1780, %v152
  %v1785 = vmul.f32 %v1783, %v152
  %v1786 = vsub.f32 %v1772, %v1784
  %v1787 = vsub.f32 %v1773, %v1785
  %v1788 = vmul.f32 %v1786, %v1786
  %v1789 = vmul.f32 %v1787, %v1787
  %v1790 = vsel %vm139, %v1788, 0.0
  %1791 = vadd.xlane.f32.xlu0 %v1790
  %v1792 = vpop.xlane.xlu0 %1791
  %v1793 = vsel %vm139, %v1789, 0.0
  %1794 = vadd.xlane.f32.xlu0 %v1793
  %v1795 = vpop.xlane.xlu0 %1794
  %v1796 = vmul.f32 %v1792, %v152
  %v1797 = vmul.f32 %v1795, %v152
  %v1798 = vadd.f32 %v1796, 1e-12
  %v1799 = vadd.f32 %v1797, 1e-12
  %v1800 = vrsqrt.pop %v1798
  %v1801 = vmul.f32 %v1800, %v1798
  %v1802 = vmul.f32 %v1801, %v1800
  %v1803 = vmul.f32 0.5, %v1802
  %v1804 = vsub.f32 1.5, %v1803
  %v1805 = vmul.f32 %v1800, %v1804
  %vm1806 = vweird.f32 %v1798
  %vm1807 = vweird.f32 %v1800
  %vm1808 = vmor %vm1806, %vm1807
  %v1809 = vsel %vm1808, %v1800, %v1805
  %v1810 = vrsqrt.pop %v1799
  %v1811 = vmul.f32 %v1810, %v1799
  %v1812 = vmul.f32 %v1811, %v1810
  %v1813 = vmul.f32 0.5, %v1812
  %v1814 = vsub.f32 1.5, %v1813
  %v1815 = vmul.f32 %v1810, %v1814
  %vm1816 = vweird.f32 %v1799
  %vm1817 = vweird.f32 %v1810
  %vm1818 = vmor %vm1816, %vm1817
  %v1819 = vsel %vm1818, %v1810, %v1815
  %v1820 = vmul.f32 %v1786, %v1809
  %v1821 = vmul.f32 %v1787, %v1819
  %v1823 = vperm.slane %v1775, 0
  %v1825 = vmul.f32 %v1820, %v1823
  %v1826 = vmul.f32 %v1821, %v1823
  %v1828 = vperm.slane %v1777, 0
  %v1830 = vadd.f32 %v1825, %v1828
  %v1831 = vadd.f32 %v1826, %v1828
  %v1833 = vrot.slane %v1831, 7
  %vm1835 = vcmask 1040384
  %v1836 = vsel %vm1835, %v1830, %v1833
  %v1837 = vpack.c.bf16 %v1836, %v1836
  %v1838 = vld [vmem:[%s19] sm:$0xf]
  %v1839 = vld [vmem:[%s19 + $0x4] sm:$0xf]
  %v1840 = vld [vmem:[%s19 + $0x8] sm:$0xf]
  %v1841 = vld [vmem:[%s19 + $0xc] sm:$0xf]
  %v1842 = vld [vmem:[%s20] sm:$0x1]
  %v1844 = vperm.slane %v1842, 0
  %v1850 = vunpack.c.l.b16 %v1838
  %v1851 = vunpack.c.l.b16 %v1839
  %v1852 = vunpack.c.l.b16 %v1840
  %v1853 = vunpack.c.l.b16 %v1841
  %v1854 = vpack.c.b16 %v1851, %v1850
  %v1855 = vpack.c.b16 %v1853, %v1852
  %v1859 = vsel %vm139, %v1837, 0
  %1861 = vmatpush.bf16.msra.mxu0 0
  %1862 = vmatpush.bf16.msra.mxu0 0
  %1863 = vmatpush.bf16.msra.mxu0 0
  %1864 = vmatpush.bf16.msra.mxu0 0
  %1865 = vmatpush.bf16.msra.mxu0 0
  %1866 = vmatpush.bf16.msra.mxu0 0
  %1867 = vmatpush.bf16.msra.mxu0 %v1855
  %1868 = vmatpush.bf16.msra.mxu0 %v1854
  %1869 = vmatmul.bf16.gmra.mxu0 %v1859
  %v1870 = vpop.f32.mrf.mxu0
  %v1871 = vadd.f32 %v1844, %v1870
  %v1872 = vpop.f32.mrf.mxu0
  %1873 = vdwg.mxu0
  %v1874 = vtanh.pop %v1871
  %v1875 = vpack.c.bf16 %v1874, %v1874
  %v1876 = vld [vmem:[%s21] sm:$0xf]
  %v1877 = vld [vmem:[%s21 + $0x4] sm:$0xf]
  %v1878 = vld [vmem:[%s21 + $0x8] sm:$0xf]
  %v1879 = vld [vmem:[%s21 + $0xc] sm:$0xf]
  %v1880 = vld [vmem:[#allocation2] sm:$0x1]
  %v1882 = vperm.slane %v1880, 0
  %v1888 = vunpack.c.l.b16 %v1876
  %v1889 = vunpack.c.l.b16 %v1877
  %v1890 = vunpack.c.l.b16 %v1878
  %v1891 = vunpack.c.l.b16 %v1879
  %v1892 = vpack.c.b16 %v1889, %v1888
  %v1893 = vpack.c.b16 %v1891, %v1890
  %v1897 = vsel %vm139, %v1875, 0
  %1899 = vmatpush.bf16.msra.mxu0 0
  %1900 = vmatpush.bf16.msra.mxu0 0
  %1901 = vmatpush.bf16.msra.mxu0 0
  %1902 = vmatpush.bf16.msra.mxu0 0
  %1903 = vmatpush.bf16.msra.mxu0 0
  %1904 = vmatpush.bf16.msra.mxu0 0
  %1905 = vmatpush.bf16.msra.mxu0 %v1893
  %1906 = vmatpush.bf16.msra.mxu0 %v1892
  %1907 = vmatmul.bf16.gmra.mxu0 %v1897
  %v1908 = vpop.f32.mrf.mxu0
  %v1909 = vadd.f32 %v1882, %v1908
  %v1910 = vpop.f32.mrf.mxu0
  %1911 = vdwg.mxu0
  %v1912 = vxor.u32 %v1909, 2147483648
  %v1913 = vmul.f32 %v1912, 1.442695
  %v1914 = vpow.pop %v1913
  %v1915 = vadd.f32 %v1914, 1.0
  %v1916 = vrcp.pop %v1915
  %v1917 = vmul.f32 %v1915, %v1916
  %v1918 = vsub.f32 1.0, %v1917
  %v1919 = vmul.f32 %v1916, %v1918
  %v1920 = vadd.f32 %v1916, %v1919
  %vm1921 = vweird.f32 %v1915
  %vm1922 = vweird.f32 %v1916
  %vm1923 = vmor %vm1921, %vm1922
  %v1924 = vsel %vm1923, %v1916, %v1920
  %v1925 = vand.u32 2147483647, %v1915
  %vm1926 = vcmp.eq.f32.partialorder %v1925, 8.507059e+37
  %v1927 = vand.u32 %v1915, 2147483648
  %v1928 = vor.u32 1.1754944e-38, %v1927
  %v1929 = vsel %vm1926, %v1928, %v1924
  %v1930 = vmul.f32 1.0, %v1929
  %vm1931 = vcmask 1024
  %1932 = vst.msk [vmem:[%s23] sm:$0x3] %vm1931, %v1930
  // Predicated region
  $region94: #{tpu_custom_call.1} parent=0 // pred_check
    _
  $region95: #{tpu_custom_call.1} parent=0 // pred_check_branch
    %1934 = sbr.rel (0) target = $region97
  $region96: #{tpu_custom_call.1} parent=0 // pred_region
    _
  $region97: #{tpu_custom_call.1} parent=0 // pred_fallthru
    _
  // Predicated region
  $region98: #{tpu_custom_call.1} parent=0 // pred_check
    _
  $region99: #{tpu_custom_call.1} parent=0 // pred_check_branch
    %1936 = sbr.rel (0) target = $region101
  $region100: #{tpu_custom_call.1} parent=0 // pred_region
    _
  $region101: #{tpu_custom_call.1} parent=0 // pred_fallthru
    _

</llo_original>
